<compile_context>
chip_gen: v5e
topology: v5e:2x2
jax: 0.10.0
libtpu: 0.0.40
codegen_flags: <defaults>
</compile_context>

<pallas_src>
import jax
import jax.numpy as jnp
from jax.experimental import pallas as pl
from jax.experimental.pallas import tpu as pltpu


def _round_up(v, m):
    return (v + m - 1) // m * m


def fnn_kernel(x_ref, w1_ref, w2_ref, w3_ref, aff_ref, o_ref):
    """One row tile through the fused FNN forward.

    aff_ref is a resident (8, H) f32 array:
      rows 0/1: layer1 scale/shift, rows 2/3: layer2, rows 4/5: layer3,
      row 6: output-head weight row, row 7: output-head bias (replicated).
    """

    def layer(h_bf16, w_ref, s, b):
        # MXU matmul: bf16 operands, f32 accumulation.
        y = jnp.dot(h_bf16, w_ref[...], preferred_element_type=jnp.float32)
        # Fused Linear bias + eval-mode BatchNorm1d (per-feature affine) + ReLU.
        return jnp.maximum(y * s + b, 0.0)
        # TODO(synk): training-mode Dropout (p=0.5) not implemented; eval-mode
        # dropout is the identity so nothing is emitted here.

    h = layer(x_ref[...], w1_ref, aff_ref[0:1, :], aff_ref[1:2, :])
    h = layer(h.astype(w2_ref.dtype), w2_ref, aff_ref[2:3, :], aff_ref[3:4, :])
    h = layer(h.astype(w3_ref.dtype), w3_ref, aff_ref[4:5, :], aff_ref[5:6, :])

    # Output head (H -> 1): f32 VPU multiply + lane reduction. Writing a true
    # (tm, 1) block keeps HBM writeback at 4 B/row (no 128-lane padded slab).
    out = jnp.sum(h * aff_ref[6:7, :], axis=-1, keepdims=True)
    o_ref[...] = (out + aff_ref[7:8, 0:1]).astype(o_ref.dtype)


def fnn_forward(x, params, *, tm=None):
    """x: [N, D] float32 (or bfloat16). Returns [N, 1] float32."""
    N, D = x.shape
    H = params["w1"].shape[1]

    # Row-tile selection: >=2 grid steps when the batch allows (so
    # dimension_semantics=("parallel",) can use both v7x TensorCores), tiles
    # up to 2048 rows to amortize the ~0.35us per-grid-step overhead,
    # multiple of 16 (bf16 sublane packing), clamped for small batches.
    if tm is None:
        tm = min(2048, pl.cdiv(N, 2))
    tm = int(_round_up(max(16, min(tm, N)), 16))
    grid_m = pl.cdiv(N, tm)

    # Stream x as bf16: halves the dominant HBM read stream; layer 1 consumes
    # it without an in-kernel cast.
    x_bf16 = x.astype(jnp.bfloat16)

    w1, w2, w3, aff = params["w1"], params["w2"], params["w3"], params["aff"]

    def nbytes(a):
        return a.size * a.dtype.itemsize

    param_bytes = nbytes(w1) + nbytes(w2) + nbytes(w3) + nbytes(aff)
    flops = int(2 * N * (D * H + 2 * H * H + H))
    bytes_accessed = int(N * D * 2 + N * 4 + param_bytes)

    # VMEM budget: resident params (<=2x in the fallback path), streamed bf16
    # x tiles, (tm, 1) f32 out tiles (lane-padded to 128 inside VMEM), and f32
    # intermediate headroom. Cap at 48 MiB (v7x has 64 MiB per TensorCore).
    vmem_est = int(2 * param_bytes
                   + 2 * tm * D * 2
                   + 2 * tm * 128 * 4
                   + 4 * tm * H * 4)
    vmem_limit = int(min(48 * 2**20, max(32 * 2**20, 2 * vmem_est)))

    def run(resident_mode):
        def full(shape):
            # Grid-invariant (resident) operand: index_map is constant.
            if resident_mode is None:
                return pl.BlockSpec(shape, lambda i: (0, 0))
            return pl.BlockSpec(shape, lambda i: (0, 0),
                                pipeline_mode=resident_mode)

        return pl.pallas_call(
            fnn_kernel,
            out_shape=jax.ShapeDtypeStruct((N, 1), jnp.float32),
            grid_spec=pltpu.PrefetchScalarGridSpec(
                num_scalar_prefetch=0,
                grid=(grid_m,),
                in_specs=[
                    pl.BlockSpec((tm, D), lambda i: (i, 0)),  # x rows (streamed)
                    full((D, H)),                             # layer1 weight
                    full((H, H)),                             # layer2 weight
                    full((H, H)),                             # layer3 weight
                    full((8, H)),                             # packed affine + head
                ],
                out_specs=pl.BlockSpec((tm, 1), lambda i: (i, 0)),
            ),
            compiler_params=pltpu.CompilerParams(
                dimension_semantics=("parallel",),
                vmem_limit_bytes=vmem_limit),
            cost_estimate=pl.CostEstimate(flops=flops,
                                          transcendentals=0,
                                          bytes_accessed=bytes_accessed),
        )(x_bf16, w1, w2, w3, aff)

    # TODO(synk): weights are assumed VMEM-resident; a large-H variant needs a
    # hidden-dim streaming loop (pltpu.emit_pipeline) or fp8 weights on v7x.
    # Single-buffer the resident operands (fetched once); fall back to default
    # double buffering on jax versions without BlockSpec.pipeline_mode.
    try:
        return run(pl.Buffered(1))
    except Exception:  # pragma: no cover - older-jax / lowering fallback
        return run(None)


def init_params(key, input_dim, hidden_dim):
    """Deterministic synthetic parameters (Linear + eval-mode BatchNorm1d).

    Matmul weights are stored pre-transposed as [in, out] in bfloat16 (MXU
    operands). All per-feature vectors (fused Linear-bias + BatchNorm scale /
    shift for the three layers, plus the 1-wide head weights and bias) are
    packed into a single (8, hidden_dim) float32 array `aff`.
    """
    keys = jax.random.split(key, 16)
    eps = 1e-5

    def linear(kw, kb, fan_in, fan_out):
        bound = float(fan_in) ** -0.5
        w = jax.random.uniform(kw, (fan_in, fan_out), jnp.float32, -bound, bound)
        b = jax.random.uniform(kb, (fan_out,), jnp.float32, -bound, bound)
        return w, b

    def bn(kg, kb, km, kv, dim):
        gamma = 1.0 + 0.1 * jax.random.normal(kg, (dim,), jnp.float32)
        beta = 0.1 * jax.random.normal(kb, (dim,), jnp.float32)
        mean = 0.1 * jax.random.normal(km, (dim,), jnp.float32)
        var = jnp.abs(jax.random.normal(kv, (dim,), jnp.float32)) + 0.5
        return gamma, beta, mean, var

    params = {}
    aff_rows = []
    dims = [(input_dim, hidden_dim), (hidden_dim, hidden_dim),
            (hidden_dim, hidden_dim)]
    for li, (din, dout) in enumerate(dims, start=1):
        k = keys[(li - 1) * 6: li * 6]
        w, b = linear(k[0], k[1], din, dout)
        gamma, beta, mean, var = bn(k[2], k[3], k[4], k[5], dout)
        # Eval-mode BN(x@W + b) == (x@W) * scale + shift
        scale = gamma / jnp.sqrt(var + eps)
        shift = (b - mean) * scale + beta
        params[f"w{li}"] = w.astype(jnp.bfloat16)
        aff_rows += [scale, shift]

    wo, bo = linear(keys[14], keys[15], hidden_dim, 1)
    aff_rows += [wo[:, 0],                                     # head weight row
                 jnp.full((hidden_dim,), bo[0], jnp.float32)]  # head bias (replicated)
    params["aff"] = jnp.stack(aff_rows, axis=0)                # (8, H) f32
    return params


def fnn_reference(x, params):
    """Plain-JAX reference with the same numerics (bf16 matmuls, f32 epilogue)."""
    aff = params["aff"]
    h_bf16 = x.astype(jnp.bfloat16)
    h = None
    for li in (1, 2, 3):
        y = jnp.dot(h_bf16, params[f"w{li}"], preferred_element_type=jnp.float32)
        h = jnp.maximum(y * aff[2 * li - 2] + aff[2 * li - 1], 0.0)
        h_bf16 = h.astype(jnp.bfloat16)
    out = jnp.sum(h * aff[6], axis=-1, keepdims=True) + aff[7, 0]
    return out


if __name__ == "__main__":
    # Small shapes consistent with FNN.forward: x is [batch, input_dim].
    # Batch deliberately NOT a multiple of the row tile, exercising the cdiv
    # grid + masked partial last block (no wrapper-side padding of x).
    N, INPUT_DIM, HIDDEN_DIM = 200, 64, 64

    key = jax.random.PRNGKey(0)
    kx, kp = jax.random.split(key)
    x = jax.random.normal(kx, (N, INPUT_DIM), jnp.float32)
    params = init_params(kp, INPUT_DIM, HIDDEN_DIM)

    out = fnn_forward(x, params)
    out = jax.block_until_ready(out)

    ref = fnn_reference(x, params)
    assert out.shape == (N, 1), out.shape
    assert jnp.allclose(out, ref, atol=2e-2, rtol=2e-2), (out, ref)

    print("KERNEL_OK")
</pallas_src>

<mosaic_0001>
module attributes {stable_mosaic.version = 11 : i64} {
  func.func @fnn_kernel(%arg0: i32, %arg1: memref<112x64xbf16, #tpu.memory_space<vmem>>, %arg2: memref<64x64xbf16, #tpu.memory_space<vmem>>, %arg3: memref<64x64xbf16, #tpu.memory_space<vmem>>, %arg4: memref<64x64xbf16, #tpu.memory_space<vmem>>, %arg5: memref<8x64xf32, #tpu.memory_space<vmem>>, %arg6: memref<112x1xf32, #tpu.memory_space<vmem>>) attributes {dimension_semantics = [#tpu.dimension_semantics<parallel>], iteration_bounds = array<i64: 2>, scalar_prefetch = 0 : i64, scratch_operands = 0 : i64, tpu.core_type = #tpu.core_type<tc>, window_params = [{transform_indices = @transform_0, window_bounds = array<i64: 112, 64>}, {pipeline_mode = #tpu.pipeline_mode<synchronous>, transform_indices = @transform_1, window_bounds = array<i64: 64, 64>}, {pipeline_mode = #tpu.pipeline_mode<synchronous>, transform_indices = @transform_2, window_bounds = array<i64: 64, 64>}, {pipeline_mode = #tpu.pipeline_mode<synchronous>, transform_indices = @transform_3, window_bounds = array<i64: 64, 64>}, {pipeline_mode = #tpu.pipeline_mode<synchronous>, transform_indices = @transform_4, window_bounds = array<i64: 8, 64>}, {transform_indices = @transform_5, window_bounds = array<i64: 112, 1>}]} {
    %c0 = arith.constant 0 : index
    %c0_0 = arith.constant 0 : index
    %0 = vector.load %arg1[%c0, %c0_0] : memref<112x64xbf16, #tpu.memory_space<vmem>>, vector<112x64xbf16>
    %c0_1 = arith.constant 0 : index
    %c0_2 = arith.constant 0 : index
    %1 = vector.load %arg5[%c0_1, %c0_2] : memref<8x64xf32, #tpu.memory_space<vmem>>, vector<1x64xf32>
    %c1 = arith.constant 1 : index
    %c0_3 = arith.constant 0 : index
    %2 = vector.load %arg5[%c1, %c0_3] : memref<8x64xf32, #tpu.memory_space<vmem>>, vector<1x64xf32>
    %c0_4 = arith.constant 0 : index
    %c0_5 = arith.constant 0 : index
    %3 = vector.load %arg2[%c0_4, %c0_5] : memref<64x64xbf16, #tpu.memory_space<vmem>>, vector<64x64xbf16>
    %cst = arith.constant dense<0.000000e+00> : vector<112x64xf32>
    %4 = tpu.matmul %0, %3, %cst {dimension_numbers = #tpu.dot_dimension_numbers<[1], [0], [0], [1], [0, 0, 1, 1], [], []>} : vector<112x64xbf16>, vector<64x64xbf16>, vector<112x64xf32> -> vector<112x64xf32>
    %5 = vector.broadcast %1 : vector<1x64xf32> to vector<112x64xf32>
    %6 = arith.mulf %4, %5 : vector<112x64xf32>
    %7 = vector.broadcast %2 : vector<1x64xf32> to vector<112x64xf32>
    %8 = arith.addf %6, %7 : vector<112x64xf32>
    %cst_6 = arith.constant 0.000000e+00 : f32
    %9 = vector.broadcast %cst_6 : f32 to vector<112x64xf32>
    %10 = arith.maximumf %8, %9 : vector<112x64xf32>
    %11 = arith.truncf %10 : vector<112x64xf32> to vector<112x64xbf16>
    %c2 = arith.constant 2 : index
    %c0_7 = arith.constant 0 : index
    %12 = vector.load %arg5[%c2, %c0_7] : memref<8x64xf32, #tpu.memory_space<vmem>>, vector<1x64xf32>
    %c3 = arith.constant 3 : index
    %c0_8 = arith.constant 0 : index
    %13 = vector.load %arg5[%c3, %c0_8] : memref<8x64xf32, #tpu.memory_space<vmem>>, vector<1x64xf32>
    %c0_9 = arith.constant 0 : index
    %c0_10 = arith.constant 0 : index
    %14 = vector.load %arg3[%c0_9, %c0_10] : memref<64x64xbf16, #tpu.memory_space<vmem>>, vector<64x64xbf16>
    %cst_11 = arith.constant dense<0.000000e+00> : vector<112x64xf32>
    %15 = tpu.matmul %11, %14, %cst_11 {dimension_numbers = #tpu.dot_dimension_numbers<[1], [0], [0], [1], [0, 0, 1, 1], [], []>} : vector<112x64xbf16>, vector<64x64xbf16>, vector<112x64xf32> -> vector<112x64xf32>
    %16 = vector.broadcast %12 : vector<1x64xf32> to vector<112x64xf32>
    %17 = arith.mulf %15, %16 : vector<112x64xf32>
    %18 = vector.broadcast %13 : vector<1x64xf32> to vector<112x64xf32>
    %19 = arith.addf %17, %18 : vector<112x64xf32>
    %cst_12 = arith.constant 0.000000e+00 : f32
    %20 = vector.broadcast %cst_12 : f32 to vector<112x64xf32>
    %21 = arith.maximumf %19, %20 : vector<112x64xf32>
    %22 = arith.truncf %21 : vector<112x64xf32> to vector<112x64xbf16>
    %c4 = arith.constant 4 : index
    %c0_13 = arith.constant 0 : index
    %23 = vector.load %arg5[%c4, %c0_13] : memref<8x64xf32, #tpu.memory_space<vmem>>, vector<1x64xf32>
    %c5 = arith.constant 5 : index
    %c0_14 = arith.constant 0 : index
    %24 = vector.load %arg5[%c5, %c0_14] : memref<8x64xf32, #tpu.memory_space<vmem>>, vector<1x64xf32>
    %c0_15 = arith.constant 0 : index
    %c0_16 = arith.constant 0 : index
    %25 = vector.load %arg4[%c0_15, %c0_16] : memref<64x64xbf16, #tpu.memory_space<vmem>>, vector<64x64xbf16>
    %cst_17 = arith.constant dense<0.000000e+00> : vector<112x64xf32>
    %26 = tpu.matmul %22, %25, %cst_17 {dimension_numbers = #tpu.dot_dimension_numbers<[1], [0], [0], [1], [0, 0, 1, 1], [], []>} : vector<112x64xbf16>, vector<64x64xbf16>, vector<112x64xf32> -> vector<112x64xf32>
    %27 = vector.broadcast %23 : vector<1x64xf32> to vector<112x64xf32>
    %28 = arith.mulf %26, %27 : vector<112x64xf32>
    %29 = vector.broadcast %24 : vector<1x64xf32> to vector<112x64xf32>
    %30 = arith.addf %28, %29 : vector<112x64xf32>
    %cst_18 = arith.constant 0.000000e+00 : f32
    %31 = vector.broadcast %cst_18 : f32 to vector<112x64xf32>
    %32 = arith.maximumf %30, %31 : vector<112x64xf32>
    %c6 = arith.constant 6 : index
    %c0_19 = arith.constant 0 : index
    %33 = vector.load %arg5[%c6, %c0_19] : memref<8x64xf32, #tpu.memory_space<vmem>>, vector<1x64xf32>
    %34 = vector.broadcast %33 : vector<1x64xf32> to vector<112x64xf32>
    %35 = arith.mulf %32, %34 : vector<112x64xf32>
    %cst_20 = arith.constant dense<0.000000e+00> : vector<112xf32>
    %36 = vector.multi_reduction <add>, %35, %cst_20 [1] : vector<112x64xf32> to vector<112xf32>
    %37 = vector.shape_cast %36 : vector<112xf32> to vector<112x1xf32>
    %c7 = arith.constant 7 : index
    %c0_21 = arith.constant 0 : index
    %38 = vector.load %arg5[%c7, %c0_21] : memref<8x64xf32, #tpu.memory_space<vmem>>, vector<1x1xf32>
    %39 = vector.broadcast %38 : vector<1x1xf32> to vector<112x1xf32>
    %40 = arith.addf %37, %39 : vector<112x1xf32>
    %c0_22 = arith.constant 0 : index
    %c0_23 = arith.constant 0 : index
    %41 = vector.load %arg6[%c0_22, %c0_23] : memref<112x1xf32, #tpu.memory_space<vmem>>, vector<112x1xf32>
    tpu.vector_store %arg6[%c0_22, %c0_23], %40 {strides = array<i32>} : memref<112x1xf32, #tpu.memory_space<vmem>>, vector<112x1xf32>,
    return
  }
  func.func @transform_0(%arg0: i32) -> (i32, i32) {
    %c0_i32 = arith.constant 0 : i32
    %c0_i32_0 = arith.constant 0 : i32
    return %arg0, %c0_i32 : i32, i32
  }
  func.func @transform_1(%arg0: i32) -> (i32, i32) {
    %c0_i32 = arith.constant 0 : i32
    %c0_i32_0 = arith.constant 0 : i32
    %c0_i32_1 = arith.constant 0 : i32
    return %c0_i32, %c0_i32_0 : i32, i32
  }
  func.func @transform_2(%arg0: i32) -> (i32, i32) {
    %c0_i32 = arith.constant 0 : i32
    %c0_i32_0 = arith.constant 0 : i32
    %c0_i32_1 = arith.constant 0 : i32
    return %c0_i32, %c0_i32_0 : i32, i32
  }
  func.func @transform_3(%arg0: i32) -> (i32, i32) {
    %c0_i32 = arith.constant 0 : i32
    %c0_i32_0 = arith.constant 0 : i32
    %c0_i32_1 = arith.constant 0 : i32
    return %c0_i32, %c0_i32_0 : i32, i32
  }
  func.func @transform_4(%arg0: i32) -> (i32, i32) {
    %c0_i32 = arith.constant 0 : i32
    %c0_i32_0 = arith.constant 0 : i32
    %c0_i32_1 = arith.constant 0 : i32
    return %c0_i32, %c0_i32_0 : i32, i32
  }
  func.func @transform_5(%arg0: i32) -> (i32, i32) {
    %c0_i32 = arith.constant 0 : i32
    %c0_i32_0 = arith.constant 0 : i32
    return %arg0, %c0_i32 : i32, i32
  }
}

module attributes {stable_mosaic.version = 11 : i64} {
  func.func @fnn_kernel(%arg0: i32, %arg1: memref<112x64xbf16, #tpu.memory_space<vmem>>, %arg2: memref<64x64xbf16, #tpu.memory_space<vmem>>, %arg3: memref<64x64xbf16, #tpu.memory_space<vmem>>, %arg4: memref<64x64xbf16, #tpu.memory_space<vmem>>, %arg5: memref<8x64xf32, #tpu.memory_space<vmem>>, %arg6: memref<112x1xf32, #tpu.memory_space<vmem>>) attributes {dimension_semantics = [#tpu.dimension_semantics<parallel>], iteration_bounds = array<i64: 2>, scalar_prefetch = 0 : i64, scratch_operands = 0 : i64, tpu.core_type = #tpu.core_type<tc>, window_params = [{transform_indices = @transform_0, window_bounds = array<i64: 112, 64>}, {pipeline_mode = #tpu.pipeline_mode<synchronous>, transform_indices = @transform_1, window_bounds = array<i64: 64, 64>}, {pipeline_mode = #tpu.pipeline_mode<synchronous>, transform_indices = @transform_2, window_bounds = array<i64: 64, 64>}, {pipeline_mode = #tpu.pipeline_mode<synchronous>, transform_indices = @transform_3, window_bounds = array<i64: 64, 64>}, {pipeline_mode = #tpu.pipeline_mode<synchronous>, transform_indices = @transform_4, window_bounds = array<i64: 8, 64>}, {transform_indices = @transform_5, window_bounds = array<i64: 112, 1>}]} {
    %c0 = arith.constant 0 : index
    %c0_0 = arith.constant 0 : index
    %0 = vector.load %arg1[%c0, %c0_0] : memref<112x64xbf16, #tpu.memory_space<vmem>>, vector<112x64xbf16>
    %c0_1 = arith.constant 0 : index
    %c0_2 = arith.constant 0 : index
    %1 = vector.load %arg5[%c0_1, %c0_2] : memref<8x64xf32, #tpu.memory_space<vmem>>, vector<1x64xf32>
    %c1 = arith.constant 1 : index
    %c0_3 = arith.constant 0 : index
    %2 = vector.load %arg5[%c1, %c0_3] : memref<8x64xf32, #tpu.memory_space<vmem>>, vector<1x64xf32>
    %c0_4 = arith.constant 0 : index
    %c0_5 = arith.constant 0 : index
    %3 = vector.load %arg2[%c0_4, %c0_5] : memref<64x64xbf16, #tpu.memory_space<vmem>>, vector<64x64xbf16>
    %cst = arith.constant dense<0.000000e+00> : vector<112x64xf32>
    %4 = tpu.matmul %0, %3, %cst {dimension_numbers = #tpu.dot_dimension_numbers<[1], [0], [0], [1], [0, 0, 1, 1], [], []>} : vector<112x64xbf16>, vector<64x64xbf16>, vector<112x64xf32> -> vector<112x64xf32>
    %5 = vector.broadcast %1 : vector<1x64xf32> to vector<112x64xf32>
    %6 = arith.mulf %4, %5 : vector<112x64xf32>
    %7 = vector.broadcast %2 : vector<1x64xf32> to vector<112x64xf32>
    %8 = arith.addf %6, %7 : vector<112x64xf32>
    %cst_6 = arith.constant 0.000000e+00 : f32
    %9 = vector.broadcast %cst_6 : f32 to vector<112x64xf32>
    %10 = arith.maximumf %8, %9 : vector<112x64xf32>
    %11 = arith.truncf %10 : vector<112x64xf32> to vector<112x64xbf16>
    %c2 = arith.constant 2 : index
    %c0_7 = arith.constant 0 : index
    %12 = vector.load %arg5[%c2, %c0_7] : memref<8x64xf32, #tpu.memory_space<vmem>>, vector<1x64xf32>
    %c3 = arith.constant 3 : index
    %c0_8 = arith.constant 0 : index
    %13 = vector.load %arg5[%c3, %c0_8] : memref<8x64xf32, #tpu.memory_space<vmem>>, vector<1x64xf32>
    %c0_9 = arith.constant 0 : index
    %c0_10 = arith.constant 0 : index
    %14 = vector.load %arg3[%c0_9, %c0_10] : memref<64x64xbf16, #tpu.memory_space<vmem>>, vector<64x64xbf16>
    %cst_11 = arith.constant dense<0.000000e+00> : vector<112x64xf32>
    %15 = tpu.matmul %11, %14, %cst_11 {dimension_numbers = #tpu.dot_dimension_numbers<[1], [0], [0], [1], [0, 0, 1, 1], [], []>} : vector<112x64xbf16>, vector<64x64xbf16>, vector<112x64xf32> -> vector<112x64xf32>
    %16 = vector.broadcast %12 : vector<1x64xf32> to vector<112x64xf32>
    %17 = arith.mulf %15, %16 : vector<112x64xf32>
    %18 = vector.broadcast %13 : vector<1x64xf32> to vector<112x64xf32>
    %19 = arith.addf %17, %18 : vector<112x64xf32>
    %cst_12 = arith.constant 0.000000e+00 : f32
    %20 = vector.broadcast %cst_12 : f32 to vector<112x64xf32>
    %21 = arith.maximumf %19, %20 : vector<112x64xf32>
    %22 = arith.truncf %21 : vector<112x64xf32> to vector<112x64xbf16>
    %c4 = arith.constant 4 : index
    %c0_13 = arith.constant 0 : index
    %23 = vector.load %arg5[%c4, %c0_13] : memref<8x64xf32, #tpu.memory_space<vmem>>, vector<1x64xf32>
    %c5 = arith.constant 5 : index
    %c0_14 = arith.constant 0 : index
    %24 = vector.load %arg5[%c5, %c0_14] : memref<8x64xf32, #tpu.memory_space<vmem>>, vector<1x64xf32>
    %c0_15 = arith.constant 0 : index
    %c0_16 = arith.constant 0 : index
    %25 = vector.load %arg4[%c0_15, %c0_16] : memref<64x64xbf16, #tpu.memory_space<vmem>>, vector<64x64xbf16>
    %cst_17 = arith.constant dense<0.000000e+00> : vector<112x64xf32>
    %26 = tpu.matmul %22, %25, %cst_17 {dimension_numbers = #tpu.dot_dimension_numbers<[1], [0], [0], [1], [0, 0, 1, 1], [], []>} : vector<112x64xbf16>, vector<64x64xbf16>, vector<112x64xf32> -> vector<112x64xf32>
    %27 = vector.broadcast %23 : vector<1x64xf32> to vector<112x64xf32>
    %28 = arith.mulf %26, %27 : vector<112x64xf32>
    %29 = vector.broadcast %24 : vector<1x64xf32> to vector<112x64xf32>
    %30 = arith.addf %28, %29 : vector<112x64xf32>
    %cst_18 = arith.constant 0.000000e+00 : f32
    %31 = vector.broadcast %cst_18 : f32 to vector<112x64xf32>
    %32 = arith.maximumf %30, %31 : vector<112x64xf32>
    %c6 = arith.constant 6 : index
    %c0_19 = arith.constant 0 : index
    %33 = vector.load %arg5[%c6, %c0_19] : memref<8x64xf32, #tpu.memory_space<vmem>>, vector<1x64xf32>
    %34 = vector.broadcast %33 : vector<1x64xf32> to vector<112x64xf32>
    %35 = arith.mulf %32, %34 : vector<112x64xf32>
    %cst_20 = arith.constant dense<0.000000e+00> : vector<112xf32>
    %36 = vector.multi_reduction <add>, %35, %cst_20 [1] : vector<112x64xf32> to vector<112xf32>
    %37 = vector.shape_cast %36 : vector<112xf32> to vector<112x1xf32>
    %c7 = arith.constant 7 : index
    %c0_21 = arith.constant 0 : index
    %38 = vector.load %arg5[%c7, %c0_21] : memref<8x64xf32, #tpu.memory_space<vmem>>, vector<1x1xf32>
    %39 = vector.broadcast %38 : vector<1x1xf32> to vector<112x1xf32>
    %40 = arith.addf %37, %39 : vector<112x1xf32>
    %c0_22 = arith.constant 0 : index
    %c0_23 = arith.constant 0 : index
    %41 = vector.load %arg6[%c0_22, %c0_23] : memref<112x1xf32, #tpu.memory_space<vmem>>, vector<112x1xf32>
    tpu.vector_store %arg6[%c0_22, %c0_23], %40 {strides = array<i32>} : memref<112x1xf32, #tpu.memory_space<vmem>>, vector<112x1xf32>,
    return
  }
  func.func @transform_0(%arg0: i32) -> (i32, i32) {
    %c0_i32 = arith.constant 0 : i32
    %c0_i32_0 = arith.constant 0 : i32
    return %arg0, %c0_i32 : i32, i32
  }
  func.func @transform_1(%arg0: i32) -> (i32, i32) {
    %c0_i32 = arith.constant 0 : i32
    %c0_i32_0 = arith.constant 0 : i32
    %c0_i32_1 = arith.constant 0 : i32
    return %c0_i32, %c0_i32_0 : i32, i32
  }
  func.func @transform_2(%arg0: i32) -> (i32, i32) {
    %c0_i32 = arith.constant 0 : i32
    %c0_i32_0 = arith.constant 0 : i32
    %c0_i32_1 = arith.constant 0 : i32
    return %c0_i32, %c0_i32_0 : i32, i32
  }
  func.func @transform_3(%arg0: i32) -> (i32, i32) {
    %c0_i32 = arith.constant 0 : i32
    %c0_i32_0 = arith.constant 0 : i32
    %c0_i32_1 = arith.constant 0 : i32
    return %c0_i32, %c0_i32_0 : i32, i32
  }
  func.func @transform_4(%arg0: i32) -> (i32, i32) {
    %c0_i32 = arith.constant 0 : i32
    %c0_i32_0 = arith.constant 0 : i32
    %c0_i32_1 = arith.constant 0 : i32
    return %c0_i32, %c0_i32_0 : i32, i32
  }
  func.func @transform_5(%arg0: i32) -> (i32, i32) {
    %c0_i32 = arith.constant 0 : i32
    %c0_i32_0 = arith.constant 0 : i32
    return %arg0, %c0_i32 : i32, i32
  }
}

</mosaic_0001>

<llo_original>
// kernel: tpu_custom_call.1
$region0: #{tpu_custom_call.1}
  #allocation0 [shape = 'u32[]', space=smem, size = 0x4, offset = 0x4, fixed_abs, tag = 'smem constant byte address 0x4 - core index']
  #allocation1 [shape = 'u32[72,128]{1,0:T(1,128)}', space=vmem, size = 0x9000, scoped, tag = 'internal scratch']
  %s0 = inlined_call_operand.vmem [shape: bf16[200,64], index: 0, kind: input, shape index: {}]
  %s1 = inlined_call_operand.vmem [shape: bf16[64,64], index: 1, kind: input, shape index: {}]
  %s2 = inlined_call_operand.vmem [shape: bf16[64,64], index: 2, kind: input, shape index: {}]
  %s3 = inlined_call_operand.vmem [shape: bf16[64,64], index: 3, kind: input, shape index: {}]
  %s4 = inlined_call_operand.vmem [shape: f32[8,64], index: 4, kind: input, shape index: {}]
  %s5 = inlined_call_operand.vmem [shape: f32[200,1], index: 5, kind: output, shape index: {}]
  %s6 = sld [smem:[#allocation0]]
  $region101: #{tpu_custom_call.1} parent=0
    _
  %s8 = ssub.s32 1, %s6
  %s9 = scalar_select 0, %s8, %s6
  $region1: #{tpu_custom_call.1} parent=0
    #allocation2 [shape = 'u8[114688]{0}', space=vmem, size = 0x1c000, scoped, tag = 'output window, operand 0']
    loop: start=0, step=1, limit=4
    $region2: #{tpu_custom_call.1} parent=1 // loop_pre_header
      _
    $region3: #{tpu_custom_call.1} parent=1 // loop_header
      %s11 = sphi 0, %s15
      %p12 = scmp.ge.s32.totalorder %s11, 4
      %s21 = sphi 0, %s23
      %s24 = sphi 0, %s21
      %s25 = sphi 0, %s24
      %s41 = sphi 0, %s25
      %s45 = sphi 0, %s45
      %s47 = sphi 0, %s45
      %s48 = sphi 0, %s47
      %s62 = sphi 0, %s48
      %s66 = sphi 0, %s66
      %s68 = sphi 0, %s66
      %s69 = sphi 0, %s68
      %s83 = sphi 0, %s69
      %s87 = sphi 0, %s87
      %s89 = sphi 0, %s87
      %s90 = sphi 0, %s89
      %s104 = sphi 0, %s90
      %s108 = sphi 0, %s108
      %s110 = sphi 0, %s108
      %s111 = sphi 0, %s110
      %s125 = sphi 0, %s111
      %s131 = sphi 0, %s133
      %s134 = sphi 0, %s131
      %s135 = sphi 0, %s134
      %s151 = sphi 0, %s135
    $region4: #{tpu_custom_call.1} parent=1 // loop_header_branch
      %14 = sbr.rel (%p12) target = $region8
    $region5: #{tpu_custom_call.1} parent=1 // loop_body
      %s16 = ssub.s32 %s11, 1
      %s17 = ssub.s32 %s11, 2
      %s18 = sadd.s32 %s11, 1
      %s19 = ssub.s32 %s11, %s18
      %p20 = scmp.eq.s32.totalorder %s19, 0
      %s22 = sadd.s32 %s21, 1
      %s23 = scalar_select %p20, %s21, %s22
      %p26 = pneg %p20
      %p27 = scmp.eq.s32.totalorder %s11, 1
      %p28 = por %p26, %p27
      %p29 = scmp.ne.s32.totalorder %s21, %s24
      %p30 = scmp.eq.s32.totalorder %s11, 0
      %p31 = por %p29, %p30
      %p32 = scmp.ne.s32.totalorder %s21, %s24
      %p33 = scmp.eq.s32.totalorder %s16, 1
      %p34 = por %p32, %p33
      %p35 = scmp.ne.s32.totalorder %s24, %s25
      %p36 = scmp.eq.s32.totalorder %s16, 0
      %p37 = por %p35, %p36
      %p38 = scmp.ne.s32.totalorder %s24, %s25
      %p39 = scmp.eq.s32.totalorder %s17, 1
      %p40 = por %p38, %p39
      %p42 = scmp.ne.s32.totalorder %s25, %s41
      %p43 = scmp.eq.s32.totalorder %s17, 0
      %p44 = por %p42, %p43
      %s46 = sadd.s32 %s45, 1
      %p49 = scmp.eq.s32.totalorder %s11, 1
      %p50 = scmp.ne.s32.totalorder %s45, %s47
      %p51 = scmp.eq.s32.totalorder %s11, 0
      %p52 = por %p50, %p51
      %p53 = scmp.ne.s32.totalorder %s45, %s47
      %p54 = scmp.eq.s32.totalorder %s16, 1
      %p55 = por %p53, %p54
      %p56 = scmp.ne.s32.totalorder %s47, %s48
      %p57 = scmp.eq.s32.totalorder %s16, 0
      %p58 = por %p56, %p57
      %p59 = scmp.ne.s32.totalorder %s47, %s48
      %p60 = scmp.eq.s32.totalorder %s17, 1
      %p61 = por %p59, %p60
      %p63 = scmp.ne.s32.totalorder %s48, %s62
      %p64 = scmp.eq.s32.totalorder %s17, 0
      %p65 = por %p63, %p64
      %s67 = sadd.s32 %s66, 1
      %p70 = scmp.eq.s32.totalorder %s11, 1
      %p71 = scmp.ne.s32.totalorder %s66, %s68
      %p72 = scmp.eq.s32.totalorder %s11, 0
      %p73 = por %p71, %p72
      %p74 = scmp.ne.s32.totalorder %s66, %s68
      %p75 = scmp.eq.s32.totalorder %s16, 1
      %p76 = por %p74, %p75
      %p77 = scmp.ne.s32.totalorder %s68, %s69
      %p78 = scmp.eq.s32.totalorder %s16, 0
      %p79 = por %p77, %p78
      %p80 = scmp.ne.s32.totalorder %s68, %s69
      %p81 = scmp.eq.s32.totalorder %s17, 1
      %p82 = por %p80, %p81
      %p84 = scmp.ne.s32.totalorder %s69, %s83
      %p85 = scmp.eq.s32.totalorder %s17, 0
      %p86 = por %p84, %p85
      %s88 = sadd.s32 %s87, 1
      %p91 = scmp.eq.s32.totalorder %s11, 1
      %p92 = scmp.ne.s32.totalorder %s87, %s89
      %p93 = scmp.eq.s32.totalorder %s11, 0
      %p94 = por %p92, %p93
      %p95 = scmp.ne.s32.totalorder %s87, %s89
      %p96 = scmp.eq.s32.totalorder %s16, 1
      %p97 = por %p95, %p96
      %p98 = scmp.ne.s32.totalorder %s89, %s90
      %p99 = scmp.eq.s32.totalorder %s16, 0
      %p100 = por %p98, %p99
      %p101 = scmp.ne.s32.totalorder %s89, %s90
      %p102 = scmp.eq.s32.totalorder %s17, 1
      %p103 = por %p101, %p102
      %p105 = scmp.ne.s32.totalorder %s90, %s104
      %p106 = scmp.eq.s32.totalorder %s17, 0
      %p107 = por %p105, %p106
      %s109 = sadd.s32 %s108, 1
      %p112 = scmp.eq.s32.totalorder %s11, 1
      %p113 = scmp.ne.s32.totalorder %s108, %s110
      %p114 = scmp.eq.s32.totalorder %s11, 0
      %p115 = por %p113, %p114
      %p116 = scmp.ne.s32.totalorder %s108, %s110
      %p117 = scmp.eq.s32.totalorder %s16, 1
      %p118 = por %p116, %p117
      %p119 = scmp.ne.s32.totalorder %s110, %s111
      %p120 = scmp.eq.s32.totalorder %s16, 0
      %p121 = por %p119, %p120
      %p122 = scmp.ne.s32.totalorder %s110, %s111
      %p123 = scmp.eq.s32.totalorder %s17, 1
      %p124 = por %p122, %p123
      %p126 = scmp.ne.s32.totalorder %s111, %s125
      %p127 = scmp.eq.s32.totalorder %s17, 0
      %p128 = por %p126, %p127
      %s129 = ssub.s32 %s11, %s18
      %p130 = scmp.eq.s32.totalorder %s129, 0
      %s132 = sadd.s32 %s131, 1
      %s133 = scalar_select %p130, %s131, %s132
      %p136 = pneg %p130
      %p137 = scmp.eq.s32.totalorder %s11, 1
      %p138 = por %p136, %p137
      %p139 = scmp.ne.s32.totalorder %s131, %s134
      %p140 = scmp.eq.s32.totalorder %s11, 0
      %p141 = por %p139, %p140
      %p142 = scmp.ne.s32.totalorder %s131, %s134
      %p143 = scmp.eq.s32.totalorder %s16, 1
      %p144 = por %p142, %p143
      %p145 = scmp.ne.s32.totalorder %s134, %s135
      %p146 = scmp.eq.s32.totalorder %s16, 0
      %p147 = por %p145, %p146
      %p148 = scmp.ne.s32.totalorder %s134, %s135
      %p149 = scmp.eq.s32.totalorder %s17, 1
      %p150 = por %p148, %p149
      %p152 = scmp.ne.s32.totalorder %s135, %s151
      %p153 = scmp.eq.s32.totalorder %s17, 0
      %p154 = por %p152, %p153
      %p155 = scmp.le.s32.totalorder 1, %s11
      %p156 = scmp.lt.s32.totalorder %s11, 3
      %p157 = pnand %p155, %p156
      %p158 = pneg %p157
      // Predicated region
      $region9: #{tpu_custom_call.1} parent=5 // pred_check
        _
      $region10: #{tpu_custom_call.1} parent=5 // pred_check_branch
        %160 = sbr.rel (%p157) target = $region12
      $region11: #{tpu_custom_call.1} parent=5 // pred_region
        %s161 = ssub.s32 %s11, 1
        // Predicated region
        $region13: #{tpu_custom_call.1} parent=11 // pred_check
          %p162 = pneg %p58
        $region14: #{tpu_custom_call.1} parent=11 // pred_check_branch
          %164 = sbr.rel (%p162) target = $region16
        $region15: #{tpu_custom_call.1} parent=11 // pred_region
          _
        $region16: #{tpu_custom_call.1} parent=11 // pred_fallthru
          _
        // Predicated region
        $region17: #{tpu_custom_call.1} parent=11 // pred_check
          %p165 = pneg %p79
        $region18: #{tpu_custom_call.1} parent=11 // pred_check_branch
          %167 = sbr.rel (%p165) target = $region20
        $region19: #{tpu_custom_call.1} parent=11 // pred_region
          _
        $region20: #{tpu_custom_call.1} parent=11 // pred_fallthru
          _
        // Predicated region
        $region21: #{tpu_custom_call.1} parent=11 // pred_check
          %p168 = pneg %p100
        $region22: #{tpu_custom_call.1} parent=11 // pred_check_branch
          %170 = sbr.rel (%p168) target = $region24
        $region23: #{tpu_custom_call.1} parent=11 // pred_region
          _
        $region24: #{tpu_custom_call.1} parent=11 // pred_fallthru
          _
        // Predicated region
        $region25: #{tpu_custom_call.1} parent=11 // pred_check
          %p171 = pneg %p121
        $region26: #{tpu_custom_call.1} parent=11 // pred_check_branch
          %173 = sbr.rel (%p171) target = $region28
        $region27: #{tpu_custom_call.1} parent=11 // pred_region
          _
        $region28: #{tpu_custom_call.1} parent=11 // pred_fallthru
          _
      $region12: #{tpu_custom_call.1} parent=5 // pred_fallthru
        _
      %p174 = scmp.lt.s32.totalorder %s11, 2
      // Predicated region
      $region29: #{tpu_custom_call.1} parent=5 // pred_check
        %p175 = pneg %p174
      $region30: #{tpu_custom_call.1} parent=5 // pred_check_branch
        %177 = sbr.rel (%p175) target = $region32
      $region31: #{tpu_custom_call.1} parent=5 // pred_region
        // Predicated region
        $region33: #{tpu_custom_call.1} parent=31 // pred_check
          %p178 = pneg %p31
        $region34: #{tpu_custom_call.1} parent=31 // pred_check_branch
          %180 = sbr.rel (%p178) target = $region36
        $region35: #{tpu_custom_call.1} parent=31 // pred_region
          %s181 = smul.u32 14, %s11
          %s182 = ssub.s32 25, %s181
          %p183 = scmp.lt.s32.totalorder %s182, 14
          %s184 = scalar_select %p183, %s182, 14
          %s185 = smul.u32 4, %s184
          %p186 = scmp.lt.s32.totalorder %s181, 24
          %s187 = scalar_select %p186, %s181, 24
          %s188 = smul.addr %s187, 4
          %s189 = scalar_lea.vmem %s0, %s188
          %s190 = smul.u32 14, %s11
          %s191 = ssub.s32 25, %s190
          %p192 = scmp.lt.s32.totalorder %s191, 14
          %s193 = scalar_select %p192, %s191, 14
          %s194 = smul.u32 4, %s193
        $region36: #{tpu_custom_call.1} parent=31 // pred_fallthru
          _
      $region32: #{tpu_custom_call.1} parent=5 // pred_fallthru
        _
      %p195 = scmp.le.s32.totalorder 1, %s11
      %p196 = scmp.lt.s32.totalorder %s11, 3
      %p197 = pnand %p195, %p196
      %p198 = pneg %p197
      // Predicated region
      $region37: #{tpu_custom_call.1} parent=5 // pred_check
        _
      $region38: #{tpu_custom_call.1} parent=5 // pred_check_branch
        %200 = sbr.rel (%p197) target = $region40
      $region39: #{tpu_custom_call.1} parent=5 // pred_region
        %s201 = ssub.s32 %s11, 1
        %s202 = smul.u32 14, %s16
        %s203 = ssub.s32 25, %s202
        %p204 = scmp.lt.s32.totalorder %s203, 14
        %s205 = scalar_select %p204, %s203, 14
        %s206 = smul.u32 4, %s205
        %p207 = scmp.lt.s32.totalorder %s202, 24
        %s208 = scalar_select %p207, %s202, 24
        %s209 = smul.addr %s208, 4
        %s210 = scalar_lea.vmem %s0, %s209
        %p211 = pneg %p37
        %p212 = pneg %p34
        %p213 = pneg %p58
        %p214 = pneg %p55
        %p215 = pneg %p79
        %p216 = pneg %p76
        %p217 = pneg %p100
        %p218 = pneg %p97
        %p219 = pneg %p121
        %p220 = pneg %p118
        %p221 = pneg %p147
        %p222 = pneg %p144
        %s223 = sand.u32 %s134, 1
        %s224 = sand.u32 %s134, 1
        %s225 = smul.addr %s224, 112
        %s226 = scalar_lea.vmem [#allocation2], %s225
        %s227 = smul.u32 14, %s16
        %s228 = ssub.s32 25, %s227
        %p229 = scmp.lt.s32.totalorder %s228, 14
        %s230 = scalar_select %p229, %s228, 14
        %s231 = smul.u32 4, %s230
        %p232 = scmp.lt.s32.totalorder %s227, 24
        %s233 = scalar_select %p232, %s227, 24
        %s234 = smul.addr %s233, 4
        %s235 = scalar_lea.vmem %s0, %s234
        %s236 = smul.u32 14, %s16
        %s237 = ssub.s32 25, %s236
        %p238 = scmp.lt.s32.totalorder %s237, 14
        %s239 = scalar_select %p238, %s237, 14
        %s240 = smul.u32 4, %s239
        %s241 = smul.u32 14, %s16
        %s242 = ssub.s32 25, %s241
        %p243 = scmp.lt.s32.totalorder %s242, 14
        %s244 = scalar_select %p243, %s242, 14
        %s245 = smul.u32 8, %s244
        %v247 = vld [vmem:[%s235] sm:$0xf]
        %v248 = vld [vmem:[%s235 + $0x4] sm:$0xf]
        %v249 = vld [vmem:[%s235 + $0x8] sm:$0xf]
        %v250 = vld [vmem:[%s235 + $0xc] sm:$0xf]
        %v251 = vld [vmem:[%s235 + $0x10] sm:$0xf]
        %v252 = vld [vmem:[%s235 + $0x14] sm:$0xf]
        %v253 = vld [vmem:[%s235 + $0x18] sm:$0xf]
        %v254 = vld [vmem:[%s235 + $0x1c] sm:$0xf]
        %v255 = vld [vmem:[%s235 + $0x20] sm:$0xf]
        %v256 = vld [vmem:[%s235 + $0x24] sm:$0xf]
        %v257 = vld [vmem:[%s235 + $0x28] sm:$0xf]
        %v258 = vld [vmem:[%s235 + $0x2c] sm:$0xf]
        %v259 = vld [vmem:[%s235 + $0x30] sm:$0xf]
        %v260 = vld [vmem:[%s235 + $0x34] sm:$0xf]
        %v261 = vld [vmem:[%s4] sm:$0x1]
        %v262 = vld [vmem:[%s4 + $0x1] sm:$0x1]
        %v263 = vld [vmem:[%s1] sm:$0xf]
        %v264 = vld [vmem:[%s1 + $0x4] sm:$0xf]
        %v265 = vld [vmem:[%s1 + $0x8] sm:$0xf]
        %v266 = vld [vmem:[%s1 + $0xc] sm:$0xf]
        %v267 = vld [vmem:[%s1 + $0x10] sm:$0xf]
        %v268 = vld [vmem:[%s1 + $0x14] sm:$0xf]
        %v269 = vld [vmem:[%s1 + $0x18] sm:$0xf]
        %v270 = vld [vmem:[%s1 + $0x1c] sm:$0xf]
        %v285 = vunpack.c.l.b16 %v247
        %v286 = vunpack.c.l.b16 %v248
        %v287 = vunpack.c.l.b16 %v249
        %v288 = vunpack.c.l.b16 %v250
        %v289 = vunpack.c.l.b16 %v251
        %v290 = vunpack.c.l.b16 %v252
        %v291 = vunpack.c.l.b16 %v253
        %v292 = vunpack.c.l.b16 %v254
        %v293 = vunpack.c.l.b16 %v255
        %v294 = vunpack.c.l.b16 %v256
        %v295 = vunpack.c.l.b16 %v257
        %v296 = vunpack.c.l.b16 %v258
        %v297 = vunpack.c.l.b16 %v259
        %v298 = vunpack.c.l.b16 %v260
        %v299 = vpack.c.b16 %v286, %v285
        %v300 = vpack.c.b16 %v288, %v287
        %v301 = vpack.c.b16 %v290, %v289
        %v302 = vpack.c.b16 %v292, %v291
        %v303 = vpack.c.b16 %v294, %v293
        %v304 = vpack.c.b16 %v296, %v295
        %v305 = vpack.c.b16 %v298, %v297
        %v314 = vunpack.c.l.b16 %v263
        %v315 = vunpack.c.l.b16 %v264
        %v316 = vunpack.c.l.b16 %v265
        %v317 = vunpack.c.l.b16 %v266
        %v318 = vunpack.c.l.b16 %v267
        %v319 = vunpack.c.l.b16 %v268
        %v320 = vunpack.c.l.b16 %v269
        %v321 = vunpack.c.l.b16 %v270
        %v322 = vpack.c.b16 %v315, %v314
        %v323 = vpack.c.b16 %v317, %v316
        %v324 = vpack.c.b16 %v319, %v318
        %v325 = vpack.c.b16 %v321, %v320
        %vm330 = vcmask 523264
        %v332 = vsel %vm330, %v299, 0
        %v335 = vsel %vm330, %v300, 0
        %v338 = vsel %vm330, %v301, 0
        %v341 = vsel %vm330, %v302, 0
        %v344 = vsel %vm330, %v303, 0
        %v347 = vsel %vm330, %v304, 0
        %v350 = vsel %vm330, %v305, 0
        %352 = vmatpush.bf16.msra.mxu0 0
        %353 = vmatpush.bf16.msra.mxu0 0
        %354 = vmatpush.bf16.msra.mxu0 0
        %355 = vmatpush.bf16.msra.mxu0 0
        %356 = vmatpush.bf16.msra.mxu0 %v325
        %357 = vmatpush.bf16.msra.mxu0 %v324
        %358 = vmatpush.bf16.msra.mxu0 %v323
        %359 = vmatpush.bf16.msra.mxu0 %v322
        %360 = vmatmul.bf16.gmra.mxu0 %v332
        %v361 = vpop.f32.mrf.mxu0
        %v362 = vadd.f32 0.0, %v361
        %v363 = vpop.f32.mrf.mxu0
        %v364 = vadd.f32 0.0, %v363
        %365 = vmatmul.bf16.gmra.mxu0 %v335
        %v366 = vpop.f32.mrf.mxu0
        %v367 = vadd.f32 0.0, %v366
        %v368 = vpop.f32.mrf.mxu0
        %v369 = vadd.f32 0.0, %v368
        %370 = vmatmul.bf16.gmra.mxu0 %v338
        %v371 = vpop.f32.mrf.mxu0
        %v372 = vadd.f32 0.0, %v371
        %v373 = vpop.f32.mrf.mxu0
        %v374 = vadd.f32 0.0, %v373
        %375 = vmatmul.bf16.gmra.mxu0 %v341
        %v376 = vpop.f32.mrf.mxu0
        %v377 = vadd.f32 0.0, %v376
        %v378 = vpop.f32.mrf.mxu0
        %v379 = vadd.f32 0.0, %v378
        %380 = vmatmul.bf16.gmra.mxu0 %v344
        %v381 = vpop.f32.mrf.mxu0
        %v382 = vadd.f32 0.0, %v381
        %v383 = vpop.f32.mrf.mxu0
        %v384 = vadd.f32 0.0, %v383
        %385 = vmatmul.bf16.gmra.mxu0 %v347
        %v386 = vpop.f32.mrf.mxu0
        %v387 = vadd.f32 0.0, %v386
        %v388 = vpop.f32.mrf.mxu0
        %v389 = vadd.f32 0.0, %v388
        %390 = vmatmul.bf16.gmra.mxu0 %v350
        %v391 = vpop.f32.mrf.mxu0
        %v392 = vadd.f32 0.0, %v391
        %v393 = vpop.f32.mrf.mxu0
        %v394 = vadd.f32 0.0, %v393
        %395 = vdwg.mxu0
        %v396 = vperm.slane %v261, 0
        %v397 = vmul.f32 %v362, %v396
        %v398 = vmul.f32 %v364, %v396
        %v399 = vmul.f32 %v367, %v396
        %v400 = vmul.f32 %v369, %v396
        %v401 = vmul.f32 %v372, %v396
        %v402 = vmul.f32 %v374, %v396
        %v403 = vmul.f32 %v377, %v396
        %v404 = vmul.f32 %v379, %v396
        %v405 = vmul.f32 %v382, %v396
        %v406 = vmul.f32 %v384, %v396
        %v407 = vmul.f32 %v387, %v396
        %v408 = vmul.f32 %v389, %v396
        %v409 = vmul.f32 %v392, %v396
        %v410 = vmul.f32 %v394, %v396
        %v411 = vperm.slane %v262, 0
        %v412 = vadd.f32 %v397, %v411
        %v413 = vadd.f32 %v398, %v411
        %v414 = vadd.f32 %v399, %v411
        %v415 = vadd.f32 %v400, %v411
        %v416 = vadd.f32 %v401, %v411
        %v417 = vadd.f32 %v402, %v411
        %v418 = vadd.f32 %v403, %v411
        %v419 = vadd.f32 %v404, %v411
        %v420 = vadd.f32 %v405, %v411
        %v421 = vadd.f32 %v406, %v411
        %v422 = vadd.f32 %v407, %v411
        %v423 = vadd.f32 %v408, %v411
        %v424 = vadd.f32 %v409, %v411
        %v425 = vadd.f32 %v410, %v411
        %v426 = vmax.f32 %v412, 0.0
        %v427 = vmax.f32 %v413, 0.0
        %v428 = vmax.f32 %v414, 0.0
        %v429 = vmax.f32 %v415, 0.0
        %v430 = vmax.f32 %v416, 0.0
        %v431 = vmax.f32 %v417, 0.0
        %v432 = vmax.f32 %v418, 0.0
        %v433 = vmax.f32 %v419, 0.0
        %v434 = vmax.f32 %v420, 0.0
        %v435 = vmax.f32 %v421, 0.0
        %v436 = vmax.f32 %v422, 0.0
        %v437 = vmax.f32 %v423, 0.0
        %v438 = vmax.f32 %v424, 0.0
        %v439 = vmax.f32 %v425, 0.0
        %v440 = vpack.c.bf16 %v427, %v426
        %v441 = vpack.c.bf16 %v429, %v428
        %v442 = vpack.c.bf16 %v431, %v430
        %v443 = vpack.c.bf16 %v433, %v432
        %v444 = vpack.c.bf16 %v435, %v434
        %v445 = vpack.c.bf16 %v437, %v436
        %v446 = vpack.c.bf16 %v439, %v438
        %v447 = vld [vmem:[%s4 + $0x2] sm:$0x1]
        %v448 = vld [vmem:[%s4 + $0x3] sm:$0x1]
        %v449 = vld [vmem:[%s2] sm:$0xf]
        %v450 = vld [vmem:[%s2 + $0x4] sm:$0xf]
        %v451 = vld [vmem:[%s2 + $0x8] sm:$0xf]
        %v452 = vld [vmem:[%s2 + $0xc] sm:$0xf]
        %v453 = vld [vmem:[%s2 + $0x10] sm:$0xf]
        %v454 = vld [vmem:[%s2 + $0x14] sm:$0xf]
        %v455 = vld [vmem:[%s2 + $0x18] sm:$0xf]
        %v456 = vld [vmem:[%s2 + $0x1c] sm:$0xf]
        %v465 = vunpack.c.l.b16 %v449
        %v466 = vunpack.c.l.b16 %v450
        %v467 = vunpack.c.l.b16 %v451
        %v468 = vunpack.c.l.b16 %v452
        %v469 = vunpack.c.l.b16 %v453
        %v470 = vunpack.c.l.b16 %v454
        %v471 = vunpack.c.l.b16 %v455
        %v472 = vunpack.c.l.b16 %v456
        %v473 = vpack.c.b16 %v466, %v465
        %v474 = vpack.c.b16 %v468, %v467
        %v475 = vpack.c.b16 %v470, %v469
        %v476 = vpack.c.b16 %v472, %v471
        %v482 = vsel %vm330, %v440, 0
        %v485 = vsel %vm330, %v441, 0
        %v488 = vsel %vm330, %v442, 0
        %v491 = vsel %vm330, %v443, 0
        %v494 = vsel %vm330, %v444, 0
        %v497 = vsel %vm330, %v445, 0
        %v500 = vsel %vm330, %v446, 0
        %502 = vmatpush.bf16.msra.mxu0 0
        %503 = vmatpush.bf16.msra.mxu0 0
        %504 = vmatpush.bf16.msra.mxu0 0
        %505 = vmatpush.bf16.msra.mxu0 0
        %506 = vmatpush.bf16.msra.mxu0 %v476
        %507 = vmatpush.bf16.msra.mxu0 %v475
        %508 = vmatpush.bf16.msra.mxu0 %v474
        %509 = vmatpush.bf16.msra.mxu0 %v473
        %510 = vmatmul.bf16.gmra.mxu0 %v482
        %v511 = vpop.f32.mrf.mxu0
        %v512 = vadd.f32 0.0, %v511
        %v513 = vpop.f32.mrf.mxu0
        %v514 = vadd.f32 0.0, %v513
        %515 = vmatmul.bf16.gmra.mxu0 %v485
        %v516 = vpop.f32.mrf.mxu0
        %v517 = vadd.f32 0.0, %v516
        %v518 = vpop.f32.mrf.mxu0
        %v519 = vadd.f32 0.0, %v518
        %520 = vmatmul.bf16.gmra.mxu0 %v488
        %v521 = vpop.f32.mrf.mxu0
        %v522 = vadd.f32 0.0, %v521
        %v523 = vpop.f32.mrf.mxu0
        %v524 = vadd.f32 0.0, %v523
        %525 = vmatmul.bf16.gmra.mxu0 %v491
        %v526 = vpop.f32.mrf.mxu0
        %v527 = vadd.f32 0.0, %v526
        %v528 = vpop.f32.mrf.mxu0
        %v529 = vadd.f32 0.0, %v528
        %530 = vmatmul.bf16.gmra.mxu0 %v494
        %v531 = vpop.f32.mrf.mxu0
        %v532 = vadd.f32 0.0, %v531
        %v533 = vpop.f32.mrf.mxu0
        %v534 = vadd.f32 0.0, %v533
        %535 = vmatmul.bf16.gmra.mxu0 %v497
        %v536 = vpop.f32.mrf.mxu0
        %v537 = vadd.f32 0.0, %v536
        %v538 = vpop.f32.mrf.mxu0
        %v539 = vadd.f32 0.0, %v538
        %540 = vmatmul.bf16.gmra.mxu0 %v500
        %v541 = vpop.f32.mrf.mxu0
        %v542 = vadd.f32 0.0, %v541
        %v543 = vpop.f32.mrf.mxu0
        %v544 = vadd.f32 0.0, %v543
        %545 = vdwg.mxu0
        %v546 = vperm.slane %v447, 0
        %v547 = vmul.f32 %v512, %v546
        %v548 = vmul.f32 %v514, %v546
        %v549 = vmul.f32 %v517, %v546
        %v550 = vmul.f32 %v519, %v546
        %v551 = vmul.f32 %v522, %v546
        %v552 = vmul.f32 %v524, %v546
        %v553 = vmul.f32 %v527, %v546
        %v554 = vmul.f32 %v529, %v546
        %v555 = vmul.f32 %v532, %v546
        %v556 = vmul.f32 %v534, %v546
        %v557 = vmul.f32 %v537, %v546
        %v558 = vmul.f32 %v539, %v546
        %v559 = vmul.f32 %v542, %v546
        %v560 = vmul.f32 %v544, %v546
        %v561 = vperm.slane %v448, 0
        %v562 = vadd.f32 %v547, %v561
        %v563 = vadd.f32 %v548, %v561
        %v564 = vadd.f32 %v549, %v561
        %v565 = vadd.f32 %v550, %v561
        %v566 = vadd.f32 %v551, %v561
        %v567 = vadd.f32 %v552, %v561
        %v568 = vadd.f32 %v553, %v561
        %v569 = vadd.f32 %v554, %v561
        %v570 = vadd.f32 %v555, %v561
        %v571 = vadd.f32 %v556, %v561
        %v572 = vadd.f32 %v557, %v561
        %v573 = vadd.f32 %v558, %v561
        %v574 = vadd.f32 %v559, %v561
        %v575 = vadd.f32 %v560, %v561
        %v576 = vmax.f32 %v562, 0.0
        %v577 = vmax.f32 %v563, 0.0
        %v578 = vmax.f32 %v564, 0.0
        %v579 = vmax.f32 %v565, 0.0
        %v580 = vmax.f32 %v566, 0.0
        %v581 = vmax.f32 %v567, 0.0
        %v582 = vmax.f32 %v568, 0.0
        %v583 = vmax.f32 %v569, 0.0
        %v584 = vmax.f32 %v570, 0.0
        %v585 = vmax.f32 %v571, 0.0
        %v586 = vmax.f32 %v572, 0.0
        %v587 = vmax.f32 %v573, 0.0
        %v588 = vmax.f32 %v574, 0.0
        %v589 = vmax.f32 %v575, 0.0
        %v590 = vpack.c.bf16 %v577, %v576
        %v591 = vpack.c.bf16 %v579, %v578
        %v592 = vpack.c.bf16 %v581, %v580
        %v593 = vpack.c.bf16 %v583, %v582
        %v594 = vpack.c.bf16 %v585, %v584
        %v595 = vpack.c.bf16 %v587, %v586
        %v596 = vpack.c.bf16 %v589, %v588
        %v597 = vld [vmem:[%s4 + $0x4] sm:$0x1]
        %v598 = vld [vmem:[%s4 + $0x5] sm:$0x1]
        %v599 = vld [vmem:[%s3] sm:$0xf]
        %v600 = vld [vmem:[%s3 + $0x4] sm:$0xf]
        %v601 = vld [vmem:[%s3 + $0x8] sm:$0xf]
        %v602 = vld [vmem:[%s3 + $0xc] sm:$0xf]
        %v603 = vld [vmem:[%s3 + $0x10] sm:$0xf]
        %v604 = vld [vmem:[%s3 + $0x14] sm:$0xf]
        %v605 = vld [vmem:[%s3 + $0x18] sm:$0xf]
        %v606 = vld [vmem:[%s3 + $0x1c] sm:$0xf]
        %v615 = vunpack.c.l.b16 %v599
        %v616 = vunpack.c.l.b16 %v600
        %v617 = vunpack.c.l.b16 %v601
        %v618 = vunpack.c.l.b16 %v602
        %v619 = vunpack.c.l.b16 %v603
        %v620 = vunpack.c.l.b16 %v604
        %v621 = vunpack.c.l.b16 %v605
        %v622 = vunpack.c.l.b16 %v606
        %v623 = vpack.c.b16 %v616, %v615
        %v624 = vpack.c.b16 %v618, %v617
        %v625 = vpack.c.b16 %v620, %v619
        %v626 = vpack.c.b16 %v622, %v621
        %v632 = vsel %vm330, %v590, 0
        %v635 = vsel %vm330, %v591, 0
        %v638 = vsel %vm330, %v592, 0
        %v641 = vsel %vm330, %v593, 0
        %v644 = vsel %vm330, %v594, 0
        %v647 = vsel %vm330, %v595, 0
        %v650 = vsel %vm330, %v596, 0
        %652 = vmatpush.bf16.msra.mxu0 0
        %653 = vmatpush.bf16.msra.mxu0 0
        %654 = vmatpush.bf16.msra.mxu0 0
        %655 = vmatpush.bf16.msra.mxu0 0
        %656 = vmatpush.bf16.msra.mxu0 %v626
        %657 = vmatpush.bf16.msra.mxu0 %v625
        %658 = vmatpush.bf16.msra.mxu0 %v624
        %659 = vmatpush.bf16.msra.mxu0 %v623
        %660 = vmatmul.bf16.gmra.mxu0 %v632
        %v661 = vpop.f32.mrf.mxu0
        %v662 = vadd.f32 0.0, %v661
        %v663 = vpop.f32.mrf.mxu0
        %v664 = vadd.f32 0.0, %v663
        %665 = vmatmul.bf16.gmra.mxu0 %v635
        %v666 = vpop.f32.mrf.mxu0
        %v667 = vadd.f32 0.0, %v666
        %v668 = vpop.f32.mrf.mxu0
        %v669 = vadd.f32 0.0, %v668
        %670 = vmatmul.bf16.gmra.mxu0 %v638
        %v671 = vpop.f32.mrf.mxu0
        %v672 = vadd.f32 0.0, %v671
        %v673 = vpop.f32.mrf.mxu0
        %v674 = vadd.f32 0.0, %v673
        %675 = vmatmul.bf16.gmra.mxu0 %v641
        %v676 = vpop.f32.mrf.mxu0
        %v677 = vadd.f32 0.0, %v676
        %v678 = vpop.f32.mrf.mxu0
        %v679 = vadd.f32 0.0, %v678
        %680 = vmatmul.bf16.gmra.mxu0 %v644
        %v681 = vpop.f32.mrf.mxu0
        %v682 = vadd.f32 0.0, %v681
        %v683 = vpop.f32.mrf.mxu0
        %v684 = vadd.f32 0.0, %v683
        %685 = vmatmul.bf16.gmra.mxu0 %v647
        %v686 = vpop.f32.mrf.mxu0
        %v687 = vadd.f32 0.0, %v686
        %v688 = vpop.f32.mrf.mxu0
        %v689 = vadd.f32 0.0, %v688
        %690 = vmatmul.bf16.gmra.mxu0 %v650
        %v691 = vpop.f32.mrf.mxu0
        %v692 = vadd.f32 0.0, %v691
        %v693 = vpop.f32.mrf.mxu0
        %v694 = vadd.f32 0.0, %v693
        %695 = vdwg.mxu0
        %v696 = vperm.slane %v597, 0
        %v697 = vmul.f32 %v662, %v696
        %v698 = vmul.f32 %v664, %v696
        %v699 = vmul.f32 %v667, %v696
        %v700 = vmul.f32 %v669, %v696
        %v701 = vmul.f32 %v672, %v696
        %v702 = vmul.f32 %v674, %v696
        %v703 = vmul.f32 %v677, %v696
        %v704 = vmul.f32 %v679, %v696
        %v705 = vmul.f32 %v682, %v696
        %v706 = vmul.f32 %v684, %v696
        %v707 = vmul.f32 %v687, %v696
        %v708 = vmul.f32 %v689, %v696
        %v709 = vmul.f32 %v692, %v696
        %v710 = vmul.f32 %v694, %v696
        %v711 = vperm.slane %v598, 0
        %v712 = vadd.f32 %v697, %v711
        %v713 = vadd.f32 %v698, %v711
        %v714 = vadd.f32 %v699, %v711
        %v715 = vadd.f32 %v700, %v711
        %v716 = vadd.f32 %v701, %v711
        %v717 = vadd.f32 %v702, %v711
        %v718 = vadd.f32 %v703, %v711
        %v719 = vadd.f32 %v704, %v711
        %v720 = vadd.f32 %v705, %v711
        %v721 = vadd.f32 %v706, %v711
        %v722 = vadd.f32 %v707, %v711
        %v723 = vadd.f32 %v708, %v711
        %v724 = vadd.f32 %v709, %v711
        %v725 = vadd.f32 %v710, %v711
        %v726 = vmax.f32 %v712, 0.0
        %v727 = vmax.f32 %v713, 0.0
        %v728 = vmax.f32 %v714, 0.0
        %v729 = vmax.f32 %v715, 0.0
        %v730 = vmax.f32 %v716, 0.0
        %v731 = vmax.f32 %v717, 0.0
        %v732 = vmax.f32 %v718, 0.0
        %v733 = vmax.f32 %v719, 0.0
        %v734 = vmax.f32 %v720, 0.0
        %v735 = vmax.f32 %v721, 0.0
        %v736 = vmax.f32 %v722, 0.0
        %v737 = vmax.f32 %v723, 0.0
        %v738 = vmax.f32 %v724, 0.0
        %v739 = vmax.f32 %v725, 0.0
        %v740 = vld [vmem:[%s4 + $0x6] sm:$0x1]
        %v741 = vperm.slane %v740, 0
        %v742 = vmul.f32 %v726, %v741
        %v743 = vmul.f32 %v727, %v741
        %v744 = vmul.f32 %v728, %v741
        %v745 = vmul.f32 %v729, %v741
        %v746 = vmul.f32 %v730, %v741
        %v747 = vmul.f32 %v731, %v741
        %v748 = vmul.f32 %v732, %v741
        %v749 = vmul.f32 %v733, %v741
        %v750 = vmul.f32 %v734, %v741
        %v751 = vmul.f32 %v735, %v741
        %v752 = vmul.f32 %v736, %v741
        %v753 = vmul.f32 %v737, %v741
        %v754 = vmul.f32 %v738, %v741
        %v755 = vmul.f32 %v739, %v741
        %v756 = vsel %vm330, %v742, 0.0
        %757 = vadd.xlane.f32.xlu0 %v756
        %v758 = vpop.xlane.xlu0 %757
        %v759 = vsel %vm330, %v743, 0.0
        %760 = vadd.xlane.f32.xlu0 %v759
        %v761 = vpop.xlane.xlu0 %760
        %v762 = vsel %vm330, %v744, 0.0
        %763 = vadd.xlane.f32.xlu0 %v762
        %v764 = vpop.xlane.xlu0 %763
        %v765 = vsel %vm330, %v745, 0.0
        %766 = vadd.xlane.f32.xlu0 %v765
        %v767 = vpop.xlane.xlu0 %766
        %v768 = vsel %vm330, %v746, 0.0
        %769 = vadd.xlane.f32.xlu0 %v768
        %v770 = vpop.xlane.xlu0 %769
        %v771 = vsel %vm330, %v747, 0.0
        %772 = vadd.xlane.f32.xlu0 %v771
        %v773 = vpop.xlane.xlu0 %772
        %v774 = vsel %vm330, %v748, 0.0
        %775 = vadd.xlane.f32.xlu0 %v774
        %v776 = vpop.xlane.xlu0 %775
        %v777 = vsel %vm330, %v749, 0.0
        %778 = vadd.xlane.f32.xlu0 %v777
        %v779 = vpop.xlane.xlu0 %778
        %v780 = vsel %vm330, %v750, 0.0
        %781 = vadd.xlane.f32.xlu0 %v780
        %v782 = vpop.xlane.xlu0 %781
        %v783 = vsel %vm330, %v751, 0.0
        %784 = vadd.xlane.f32.xlu0 %v783
        %v785 = vpop.xlane.xlu0 %784
        %v786 = vsel %vm330, %v752, 0.0
        %787 = vadd.xlane.f32.xlu0 %v786
        %v788 = vpop.xlane.xlu0 %787
        %v789 = vsel %vm330, %v753, 0.0
        %790 = vadd.xlane.f32.xlu0 %v789
        %v791 = vpop.xlane.xlu0 %790
        %v792 = vsel %vm330, %v754, 0.0
        %793 = vadd.xlane.f32.xlu0 %v792
        %v794 = vpop.xlane.xlu0 %793
        %v795 = vsel %vm330, %v755, 0.0
        %796 = vadd.xlane.f32.xlu0 %v795
        %v797 = vpop.xlane.xlu0 %796
        %v798 = vld [vmem:[%s4 + $0x7] sm:$0x1]
        %v799 = vperm.slane %v798, 0
        %v800 = vadd.f32 %v758, %v799
        %v801 = vadd.f32 %v761, %v799
        %v802 = vadd.f32 %v764, %v799
        %v803 = vadd.f32 %v767, %v799
        %v804 = vadd.f32 %v770, %v799
        %v805 = vadd.f32 %v773, %v799
        %v806 = vadd.f32 %v776, %v799
        %v807 = vadd.f32 %v779, %v799
        %v808 = vadd.f32 %v782, %v799
        %v809 = vadd.f32 %v785, %v799
        %v810 = vadd.f32 %v788, %v799
        %v811 = vadd.f32 %v791, %v799
        %v812 = vadd.f32 %v794, %v799
        %v813 = vadd.f32 %v797, %v799
        %vm814 = vcmask 7168
        %815 = vst.msk [vmem:[%s226] sm:$0xff] %vm814, %v800
        %816 = vst.msk [vmem:[%s226 + $0x8] sm:$0xff] %vm814, %v801
        %817 = vst.msk [vmem:[%s226 + $0x10] sm:$0xff] %vm814, %v802
        %818 = vst.msk [vmem:[%s226 + $0x18] sm:$0xff] %vm814, %v803
        %819 = vst.msk [vmem:[%s226 + $0x20] sm:$0xff] %vm814, %v804
        %820 = vst.msk [vmem:[%s226 + $0x28] sm:$0xff] %vm814, %v805
        %821 = vst.msk [vmem:[%s226 + $0x30] sm:$0xff] %vm814, %v806
        %822 = vst.msk [vmem:[%s226 + $0x38] sm:$0xff] %vm814, %v807
        %823 = vst.msk [vmem:[%s226 + $0x40] sm:$0xff] %vm814, %v808
        %824 = vst.msk [vmem:[%s226 + $0x48] sm:$0xff] %vm814, %v809
        %825 = vst.msk [vmem:[%s226 + $0x50] sm:$0xff] %vm814, %v810
        %826 = vst.msk [vmem:[%s226 + $0x58] sm:$0xff] %vm814, %v811
        %827 = vst.msk [vmem:[%s226 + $0x60] sm:$0xff] %vm814, %v812
        %828 = vst.msk [vmem:[%s226 + $0x68] sm:$0xff] %vm814, %v813
        %s829 = sand.u32 %s134, 1
        %s830 = sand.u32 %s134, 1
        %s831 = smul.addr %s830, 112
        %s832 = scalar_lea.vmem [#allocation2], %s831
        // Predicated region
        $region41: #{tpu_custom_call.1} parent=39 // pred_check
          %p833 = pneg %p144
        $region42: #{tpu_custom_call.1} parent=39 // pred_check_branch
          %835 = sbr.rel (%p833) target = $region44
        $region43: #{tpu_custom_call.1} parent=39 // pred_region
          %s836 = smul.u32 14, %s16
          %s837 = ssub.s32 25, %s836
          %p838 = scmp.lt.s32.totalorder %s837, 14
          %s839 = scalar_select %p838, %s837, 14
          %s840 = smul.u32 8, %s839
          %p841 = scmp.ne.s32.totalorder 0, %s840
          %s842 = smul.addr %s836, 8
          %s843 = scalar_lea.vmem %s5, %s842
          // Predicated region
          $region45: #{tpu_custom_call.1} parent=43 // pred_check
            %p844 = pneg %p841
          $region46: #{tpu_custom_call.1} parent=43 // pred_check_branch
            %846 = sbr.rel (%p844) target = $region48
          $region47: #{tpu_custom_call.1} parent=43 // pred_region
            // Predicated region
            $region49: #{tpu_custom_call.1} parent=47 // pred_check
              _
            $region50: #{tpu_custom_call.1} parent=47 // pred_check_branch
              %848 = sbr.rel (0) target = $region52
            $region51: #{tpu_custom_call.1} parent=47 // pred_region
              // Predicated region
              $region71: #{tpu_custom_call.1} parent=51 // pred_check
                _
              $region72: #{tpu_custom_call.1} parent=51 // pred_check_branch
                %925 = sbr.rel (0) target = $region74
              $region73: #{tpu_custom_call.1} parent=51 // pred_region
                %s926 = sdiv.u32.pop %s839, 14
                %s927 = srem.u32.pop %s839, 14
                // While loop
                $region75: #{tpu_custom_call.1} parent=73 // loop_pre_header
                  _
                $region76: #{tpu_custom_call.1} parent=73 // loop_header
                  %s929 = sphi 0, %s931
                  %p930 = scmp.ge.s32.totalorder %s929, %s926
                  %s934 = sphi 0, %s967
                  %s935 = sphi %s832, %s970
                  %s936 = sphi %s843, %s971
                $region77: #{tpu_custom_call.1} parent=73 // loop_header_branch
                  %933 = sbr.rel (%p930) target = $region81
                $region78: #{tpu_custom_call.1} parent=73 // loop_body
                  %v937 = vld [vmem:[%s935] sm:$0xff]
                  %938 = vst [vmem:[%s936] sm:$0xff] %v937
                  %v939 = vld [vmem:[%s935 + $0x8] sm:$0xff]
                  %940 = vst [vmem:[%s936 + $0x8] sm:$0xff] %v939
                  %v941 = vld [vmem:[%s935 + $0x10] sm:$0xff]
                  %942 = vst [vmem:[%s936 + $0x10] sm:$0xff] %v941
                  %v943 = vld [vmem:[%s935 + $0x18] sm:$0xff]
                  %944 = vst [vmem:[%s936 + $0x18] sm:$0xff] %v943
                  %v945 = vld [vmem:[%s935 + $0x20] sm:$0xff]
                  %946 = vst [vmem:[%s936 + $0x20] sm:$0xff] %v945
                  %v947 = vld [vmem:[%s935 + $0x28] sm:$0xff]
                  %948 = vst [vmem:[%s936 + $0x28] sm:$0xff] %v947
                  %v949 = vld [vmem:[%s935 + $0x30] sm:$0xff]
                  %950 = vst [vmem:[%s936 + $0x30] sm:$0xff] %v949
                  %v951 = vld [vmem:[%s935 + $0x38] sm:$0xff]
                  %952 = vst [vmem:[%s936 + $0x38] sm:$0xff] %v951
                  %v953 = vld [vmem:[%s935 + $0x40] sm:$0xff]
                  %954 = vst [vmem:[%s936 + $0x40] sm:$0xff] %v953
                  %v955 = vld [vmem:[%s935 + $0x48] sm:$0xff]
                  %956 = vst [vmem:[%s936 + $0x48] sm:$0xff] %v955
                  %v957 = vld [vmem:[%s935 + $0x50] sm:$0xff]
                  %958 = vst [vmem:[%s936 + $0x50] sm:$0xff] %v957
                  %v959 = vld [vmem:[%s935 + $0x58] sm:$0xff]
                  %960 = vst [vmem:[%s936 + $0x58] sm:$0xff] %v959
                  %v961 = vld [vmem:[%s935 + $0x60] sm:$0xff]
                  %962 = vst [vmem:[%s936 + $0x60] sm:$0xff] %v961
                  %v963 = vld [vmem:[%s935 + $0x68] sm:$0xff]
                  %964 = vst [vmem:[%s936 + $0x68] sm:$0xff] %v963
                  %s965 = sadd.s32 1, %s934
                  %p966 = scmp.ge.s32.totalorder %s965, %s926
                  %s967 = scalar_select %p966, 0, %s965
                  %s968 = smul.u32 %s967, 112
                  %s969 = smul.u32 %s967, 112
                  %s970 = scalar_lea.vmem %s832, %s968 [#allocation2]
                  %s971 = scalar_lea.vmem %s843, %s969
                $region79: #{tpu_custom_call.1} parent=73 // loop_footer
                  %s931 = sadd.s32 %s929, 1
                $region80: #{tpu_custom_call.1} parent=73 // loop_footer_branch
                  %928 = sbr.rel target = $region76
                $region81: #{tpu_custom_call.1} parent=73 // loop_exit
                  _
                %s972 = sdiv.u32.pop %s839, 14
                %s973 = srem.u32.pop %s839, 14
                %s974 = smul.u32 %s972, 14
                %s975 = smul.u32 8, %s974
                %s976 = scalar_lea.vmem %s832, %s975 [#allocation2]
                %s977 = smul.u32 8, %s974
                %s978 = scalar_lea.vmem %s843, %s977
                // While loop
                $region82: #{tpu_custom_call.1} parent=73 // loop_pre_header
                  _
                $region83: #{tpu_custom_call.1} parent=73 // loop_header
                  %s980 = sphi 0, %s982
                  %p981 = scmp.ge.s32.totalorder %s980, %s973
                  %s985 = sphi 0, %s992
                  %s986 = sphi %s976, %s995
                  %s987 = sphi %s978, %s996
                $region84: #{tpu_custom_call.1} parent=73 // loop_header_branch
                  %984 = sbr.rel (%p981) target = $region88
                $region85: #{tpu_custom_call.1} parent=73 // loop_body
                  %v988 = vld [vmem:[%s986] sm:$0xff]
                  %989 = vst [vmem:[%s987] sm:$0xff] %v988
                  %s990 = sadd.s32 1, %s985
                  %p991 = scmp.ge.s32.totalorder %s990, %s973
                  %s992 = scalar_select %p991, 0, %s990
                  %s993 = smul.u32 %s992, 8
                  %s994 = smul.u32 %s992, 8
                  %s995 = scalar_lea.vmem %s976, %s993 [#allocation2]
                  %s996 = scalar_lea.vmem %s978, %s994
                $region86: #{tpu_custom_call.1} parent=73 // loop_footer
                  %s982 = sadd.s32 %s980, 1
                $region87: #{tpu_custom_call.1} parent=73 // loop_footer_branch
                  %979 = sbr.rel target = $region83
                $region88: #{tpu_custom_call.1} parent=73 // loop_exit
                  _
              $region74: #{tpu_custom_call.1} parent=51 // pred_fallthru
                _
              // Predicated region
              $region89: #{tpu_custom_call.1} parent=51 // pred_check
                _
              $region90: #{tpu_custom_call.1} parent=51 // pred_check_branch
                %998 = sbr.rel target = $region92
              $region91: #{tpu_custom_call.1} parent=51 // pred_region
                _
              $region92: #{tpu_custom_call.1} parent=51 // pred_fallthru
                _
            $region52: #{tpu_custom_call.1} parent=47 // pred_fallthru
              _
            // Predicated region
            $region53: #{tpu_custom_call.1} parent=47 // pred_check
              _
            $region54: #{tpu_custom_call.1} parent=47 // pred_check_branch
              %850 = sbr.rel target = $region56
            $region55: #{tpu_custom_call.1} parent=47 // pred_region
              %s852 = ssub.s32 256, 1
              %s853 = sdiv.u32.pop %s839, 14
              %s854 = srem.u32.pop %s839, 14
              // While loop
              $region57: #{tpu_custom_call.1} parent=55 // loop_pre_header
                _
              $region58: #{tpu_custom_call.1} parent=55 // loop_header
                %s856 = sphi 0, %s858
                %p857 = scmp.ge.s32.totalorder %s856, %s853
                %s861 = sphi 0, %s894
                %s862 = sphi %s832, %s897
                %s863 = sphi %s843, %s898
              $region59: #{tpu_custom_call.1} parent=55 // loop_header_branch
                %860 = sbr.rel (%p857) target = $region63
              $region60: #{tpu_custom_call.1} parent=55 // loop_body
                %v864 = vld [vmem:[%s862] sm:%s852]
                %865 = vst [vmem:[%s863] sm:%s852] %v864
                %v866 = vld [vmem:[%s862 + $0x8] sm:%s852]
                %867 = vst [vmem:[%s863 + $0x8] sm:%s852] %v866
                %v868 = vld [vmem:[%s862 + $0x10] sm:%s852]
                %869 = vst [vmem:[%s863 + $0x10] sm:%s852] %v868
                %v870 = vld [vmem:[%s862 + $0x18] sm:%s852]
                %871 = vst [vmem:[%s863 + $0x18] sm:%s852] %v870
                %v872 = vld [vmem:[%s862 + $0x20] sm:%s852]
                %873 = vst [vmem:[%s863 + $0x20] sm:%s852] %v872
                %v874 = vld [vmem:[%s862 + $0x28] sm:%s852]
                %875 = vst [vmem:[%s863 + $0x28] sm:%s852] %v874
                %v876 = vld [vmem:[%s862 + $0x30] sm:%s852]
                %877 = vst [vmem:[%s863 + $0x30] sm:%s852] %v876
                %v878 = vld [vmem:[%s862 + $0x38] sm:%s852]
                %879 = vst [vmem:[%s863 + $0x38] sm:%s852] %v878
                %v880 = vld [vmem:[%s862 + $0x40] sm:%s852]
                %881 = vst [vmem:[%s863 + $0x40] sm:%s852] %v880
                %v882 = vld [vmem:[%s862 + $0x48] sm:%s852]
                %883 = vst [vmem:[%s863 + $0x48] sm:%s852] %v882
                %v884 = vld [vmem:[%s862 + $0x50] sm:%s852]
                %885 = vst [vmem:[%s863 + $0x50] sm:%s852] %v884
                %v886 = vld [vmem:[%s862 + $0x58] sm:%s852]
                %887 = vst [vmem:[%s863 + $0x58] sm:%s852] %v886
                %v888 = vld [vmem:[%s862 + $0x60] sm:%s852]
                %889 = vst [vmem:[%s863 + $0x60] sm:%s852] %v888
                %v890 = vld [vmem:[%s862 + $0x68] sm:%s852]
                %891 = vst [vmem:[%s863 + $0x68] sm:%s852] %v890
                %s892 = sadd.s32 1, %s861
                %p893 = scmp.ge.s32.totalorder %s892, %s853
                %s894 = scalar_select %p893, 0, %s892
                %s895 = smul.u32 %s894, 112
                %s896 = smul.u32 %s894, 112
                %s897 = scalar_lea.vmem %s832, %s895 [#allocation2]
                %s898 = scalar_lea.vmem %s843, %s896
              $region61: #{tpu_custom_call.1} parent=55 // loop_footer
                %s858 = sadd.s32 %s856, 1
              $region62: #{tpu_custom_call.1} parent=55 // loop_footer_branch
                %855 = sbr.rel target = $region58
              $region63: #{tpu_custom_call.1} parent=55 // loop_exit
                _
              %s899 = sdiv.u32.pop %s839, 14
              %s900 = srem.u32.pop %s839, 14
              %s901 = smul.u32 %s899, 14
              %s902 = smul.u32 8, %s901
              %s903 = scalar_lea.vmem %s832, %s902 [#allocation2]
              %s904 = smul.u32 8, %s901
              %s905 = scalar_lea.vmem %s843, %s904
              // While loop
              $region64: #{tpu_custom_call.1} parent=55 // loop_pre_header
                _
              $region65: #{tpu_custom_call.1} parent=55 // loop_header
                %s907 = sphi 0, %s909
                %p908 = scmp.ge.s32.totalorder %s907, %s900
                %s912 = sphi 0, %s919
                %s913 = sphi %s903, %s922
                %s914 = sphi %s905, %s923
              $region66: #{tpu_custom_call.1} parent=55 // loop_header_branch
                %911 = sbr.rel (%p908) target = $region70
              $region67: #{tpu_custom_call.1} parent=55 // loop_body
                %v915 = vld [vmem:[%s913] sm:%s852]
                %916 = vst [vmem:[%s914] sm:%s852] %v915
                %s917 = sadd.s32 1, %s912
                %p918 = scmp.ge.s32.totalorder %s917, %s900
                %s919 = scalar_select %p918, 0, %s917
                %s920 = smul.u32 %s919, 8
                %s921 = smul.u32 %s919, 8
                %s922 = scalar_lea.vmem %s903, %s920 [#allocation2]
                %s923 = scalar_lea.vmem %s905, %s921
              $region68: #{tpu_custom_call.1} parent=55 // loop_footer
                %s909 = sadd.s32 %s907, 1
              $region69: #{tpu_custom_call.1} parent=55 // loop_footer_branch
                %906 = sbr.rel target = $region65
              $region70: #{tpu_custom_call.1} parent=55 // loop_exit
                _
            $region56: #{tpu_custom_call.1} parent=47 // pred_fallthru
              _
          $region48: #{tpu_custom_call.1} parent=43 // pred_fallthru
            _
          %999 = vnop
        $region44: #{tpu_custom_call.1} parent=39 // pred_fallthru
          _
      $region40: #{tpu_custom_call.1} parent=5 // pred_fallthru
        _
      %p1000 = scmp.le.s32.totalorder 2, %s11
      // Predicated region
      $region93: #{tpu_custom_call.1} parent=5 // pred_check
        %p1001 = pneg %p1000
      $region94: #{tpu_custom_call.1} parent=5 // pred_check_branch
        %1003 = sbr.rel (%p1001) target = $region96
      $region95: #{tpu_custom_call.1} parent=5 // pred_region
        %s1004 = ssub.s32 %s11, 2
        // Predicated region
        $region97: #{tpu_custom_call.1} parent=95 // pred_check
          %p1005 = pneg %p150
        $region98: #{tpu_custom_call.1} parent=95 // pred_check_branch
          %1007 = sbr.rel (%p1005) target = $region100
        $region99: #{tpu_custom_call.1} parent=95 // pred_region
          %s1008 = sand.u32 %s135, 1
          %s1009 = sand.u32 %s135, 1
          %s1010 = smul.addr %s1009, 112
          %s1011 = scalar_lea.vmem [#allocation2], %s1010
        $region100: #{tpu_custom_call.1} parent=95 // pred_fallthru
          _
      $region96: #{tpu_custom_call.1} parent=5 // pred_fallthru
        _
    $region6: #{tpu_custom_call.1} parent=1 // loop_footer
      %s15 = sadd.s32 1, %s11
    $region7: #{tpu_custom_call.1} parent=1 // loop_footer_branch
      %10 = sbr.rel target = $region3
    $region8: #{tpu_custom_call.1} parent=1 // loop_exit
      _

// kernel: tpu_custom_call.1
$region0: #{tpu_custom_call.1}
  #allocation0 [shape = 'u32[]', space=smem, size = 0x4, offset = 0x4, fixed_abs, tag = 'smem constant byte address 0x4 - core index']
  #allocation1 [shape = 'u32[72,128]{1,0:T(1,128)}', space=vmem, size = 0x9000, scoped, tag = 'internal scratch']
  %s0 = inlined_call_operand.vmem [shape: bf16[200,64], index: 0, kind: input, shape index: {}]
  %s1 = inlined_call_operand.vmem [shape: bf16[64,64], index: 1, kind: input, shape index: {}]
  %s2 = inlined_call_operand.vmem [shape: bf16[64,64], index: 2, kind: input, shape index: {}]
  %s3 = inlined_call_operand.vmem [shape: bf16[64,64], index: 3, kind: input, shape index: {}]
  %s4 = inlined_call_operand.vmem [shape: f32[8,64], index: 4, kind: input, shape index: {}]
  %s5 = inlined_call_operand.vmem [shape: f32[200,1], index: 5, kind: output, shape index: {}]
  %s6 = sld [smem:[#allocation0]]
  $region101: #{tpu_custom_call.1} parent=0
    _
  %s8 = ssub.s32 1, %s6
  %s9 = scalar_select 0, %s8, %s6
  $region1: #{tpu_custom_call.1} parent=0
    #allocation2 [shape = 'u8[114688]{0}', space=vmem, size = 0x1c000, scoped, tag = 'output window, operand 0']
    loop: start=0, step=1, limit=4
    $region2: #{tpu_custom_call.1} parent=1 // loop_pre_header
      _
    $region3: #{tpu_custom_call.1} parent=1 // loop_header
      %s11 = sphi 0, %s15
      %p12 = scmp.ge.s32.totalorder %s11, 4
      %s21 = sphi 0, %s23
      %s24 = sphi 0, %s21
      %s25 = sphi 0, %s24
      %s41 = sphi 0, %s25
      %s45 = sphi 0, %s45
      %s47 = sphi 0, %s45
      %s48 = sphi 0, %s47
      %s62 = sphi 0, %s48
      %s66 = sphi 0, %s66
      %s68 = sphi 0, %s66
      %s69 = sphi 0, %s68
      %s83 = sphi 0, %s69
      %s87 = sphi 0, %s87
      %s89 = sphi 0, %s87
      %s90 = sphi 0, %s89
      %s104 = sphi 0, %s90
      %s108 = sphi 0, %s108
      %s110 = sphi 0, %s108
      %s111 = sphi 0, %s110
      %s125 = sphi 0, %s111
      %s131 = sphi 0, %s133
      %s134 = sphi 0, %s131
      %s135 = sphi 0, %s134
      %s151 = sphi 0, %s135
    $region4: #{tpu_custom_call.1} parent=1 // loop_header_branch
      %14 = sbr.rel (%p12) target = $region8
    $region5: #{tpu_custom_call.1} parent=1 // loop_body
      %s16 = ssub.s32 %s11, 1
      %s17 = ssub.s32 %s11, 2
      %s18 = sadd.s32 %s11, 1
      %s19 = ssub.s32 %s11, %s18
      %p20 = scmp.eq.s32.totalorder %s19, 0
      %s22 = sadd.s32 %s21, 1
      %s23 = scalar_select %p20, %s21, %s22
      %p26 = pneg %p20
      %p27 = scmp.eq.s32.totalorder %s11, 1
      %p28 = por %p26, %p27
      %p29 = scmp.ne.s32.totalorder %s21, %s24
      %p30 = scmp.eq.s32.totalorder %s11, 0
      %p31 = por %p29, %p30
      %p32 = scmp.ne.s32.totalorder %s21, %s24
      %p33 = scmp.eq.s32.totalorder %s16, 1
      %p34 = por %p32, %p33
      %p35 = scmp.ne.s32.totalorder %s24, %s25
      %p36 = scmp.eq.s32.totalorder %s16, 0
      %p37 = por %p35, %p36
      %p38 = scmp.ne.s32.totalorder %s24, %s25
      %p39 = scmp.eq.s32.totalorder %s17, 1
      %p40 = por %p38, %p39
      %p42 = scmp.ne.s32.totalorder %s25, %s41
      %p43 = scmp.eq.s32.totalorder %s17, 0
      %p44 = por %p42, %p43
      %s46 = sadd.s32 %s45, 1
      %p49 = scmp.eq.s32.totalorder %s11, 1
      %p50 = scmp.ne.s32.totalorder %s45, %s47
      %p51 = scmp.eq.s32.totalorder %s11, 0
      %p52 = por %p50, %p51
      %p53 = scmp.ne.s32.totalorder %s45, %s47
      %p54 = scmp.eq.s32.totalorder %s16, 1
      %p55 = por %p53, %p54
      %p56 = scmp.ne.s32.totalorder %s47, %s48
      %p57 = scmp.eq.s32.totalorder %s16, 0
      %p58 = por %p56, %p57
      %p59 = scmp.ne.s32.totalorder %s47, %s48
      %p60 = scmp.eq.s32.totalorder %s17, 1
      %p61 = por %p59, %p60
      %p63 = scmp.ne.s32.totalorder %s48, %s62
      %p64 = scmp.eq.s32.totalorder %s17, 0
      %p65 = por %p63, %p64
      %s67 = sadd.s32 %s66, 1
      %p70 = scmp.eq.s32.totalorder %s11, 1
      %p71 = scmp.ne.s32.totalorder %s66, %s68
      %p72 = scmp.eq.s32.totalorder %s11, 0
      %p73 = por %p71, %p72
      %p74 = scmp.ne.s32.totalorder %s66, %s68
      %p75 = scmp.eq.s32.totalorder %s16, 1
      %p76 = por %p74, %p75
      %p77 = scmp.ne.s32.totalorder %s68, %s69
      %p78 = scmp.eq.s32.totalorder %s16, 0
      %p79 = por %p77, %p78
      %p80 = scmp.ne.s32.totalorder %s68, %s69
      %p81 = scmp.eq.s32.totalorder %s17, 1
      %p82 = por %p80, %p81
      %p84 = scmp.ne.s32.totalorder %s69, %s83
      %p85 = scmp.eq.s32.totalorder %s17, 0
      %p86 = por %p84, %p85
      %s88 = sadd.s32 %s87, 1
      %p91 = scmp.eq.s32.totalorder %s11, 1
      %p92 = scmp.ne.s32.totalorder %s87, %s89
      %p93 = scmp.eq.s32.totalorder %s11, 0
      %p94 = por %p92, %p93
      %p95 = scmp.ne.s32.totalorder %s87, %s89
      %p96 = scmp.eq.s32.totalorder %s16, 1
      %p97 = por %p95, %p96
      %p98 = scmp.ne.s32.totalorder %s89, %s90
      %p99 = scmp.eq.s32.totalorder %s16, 0
      %p100 = por %p98, %p99
      %p101 = scmp.ne.s32.totalorder %s89, %s90
      %p102 = scmp.eq.s32.totalorder %s17, 1
      %p103 = por %p101, %p102
      %p105 = scmp.ne.s32.totalorder %s90, %s104
      %p106 = scmp.eq.s32.totalorder %s17, 0
      %p107 = por %p105, %p106
      %s109 = sadd.s32 %s108, 1
      %p112 = scmp.eq.s32.totalorder %s11, 1
      %p113 = scmp.ne.s32.totalorder %s108, %s110
      %p114 = scmp.eq.s32.totalorder %s11, 0
      %p115 = por %p113, %p114
      %p116 = scmp.ne.s32.totalorder %s108, %s110
      %p117 = scmp.eq.s32.totalorder %s16, 1
      %p118 = por %p116, %p117
      %p119 = scmp.ne.s32.totalorder %s110, %s111
      %p120 = scmp.eq.s32.totalorder %s16, 0
      %p121 = por %p119, %p120
      %p122 = scmp.ne.s32.totalorder %s110, %s111
      %p123 = scmp.eq.s32.totalorder %s17, 1
      %p124 = por %p122, %p123
      %p126 = scmp.ne.s32.totalorder %s111, %s125
      %p127 = scmp.eq.s32.totalorder %s17, 0
      %p128 = por %p126, %p127
      %s129 = ssub.s32 %s11, %s18
      %p130 = scmp.eq.s32.totalorder %s129, 0
      %s132 = sadd.s32 %s131, 1
      %s133 = scalar_select %p130, %s131, %s132
      %p136 = pneg %p130
      %p137 = scmp.eq.s32.totalorder %s11, 1
      %p138 = por %p136, %p137
      %p139 = scmp.ne.s32.totalorder %s131, %s134
      %p140 = scmp.eq.s32.totalorder %s11, 0
      %p141 = por %p139, %p140
      %p142 = scmp.ne.s32.totalorder %s131, %s134
      %p143 = scmp.eq.s32.totalorder %s16, 1
      %p144 = por %p142, %p143
      %p145 = scmp.ne.s32.totalorder %s134, %s135
      %p146 = scmp.eq.s32.totalorder %s16, 0
      %p147 = por %p145, %p146
      %p148 = scmp.ne.s32.totalorder %s134, %s135
      %p149 = scmp.eq.s32.totalorder %s17, 1
      %p150 = por %p148, %p149
      %p152 = scmp.ne.s32.totalorder %s135, %s151
      %p153 = scmp.eq.s32.totalorder %s17, 0
      %p154 = por %p152, %p153
      %p155 = scmp.le.s32.totalorder 1, %s11
      %p156 = scmp.lt.s32.totalorder %s11, 3
      %p157 = pnand %p155, %p156
      %p158 = pneg %p157
      // Predicated region
      $region9: #{tpu_custom_call.1} parent=5 // pred_check
        _
      $region10: #{tpu_custom_call.1} parent=5 // pred_check_branch
        %160 = sbr.rel (%p157) target = $region12
      $region11: #{tpu_custom_call.1} parent=5 // pred_region
        %s161 = ssub.s32 %s11, 1
        // Predicated region
        $region13: #{tpu_custom_call.1} parent=11 // pred_check
          %p162 = pneg %p58
        $region14: #{tpu_custom_call.1} parent=11 // pred_check_branch
          %164 = sbr.rel (%p162) target = $region16
        $region15: #{tpu_custom_call.1} parent=11 // pred_region
          _
        $region16: #{tpu_custom_call.1} parent=11 // pred_fallthru
          _
        // Predicated region
        $region17: #{tpu_custom_call.1} parent=11 // pred_check
          %p165 = pneg %p79
        $region18: #{tpu_custom_call.1} parent=11 // pred_check_branch
          %167 = sbr.rel (%p165) target = $region20
        $region19: #{tpu_custom_call.1} parent=11 // pred_region
          _
        $region20: #{tpu_custom_call.1} parent=11 // pred_fallthru
          _
        // Predicated region
        $region21: #{tpu_custom_call.1} parent=11 // pred_check
          %p168 = pneg %p100
        $region22: #{tpu_custom_call.1} parent=11 // pred_check_branch
          %170 = sbr.rel (%p168) target = $region24
        $region23: #{tpu_custom_call.1} parent=11 // pred_region
          _
        $region24: #{tpu_custom_call.1} parent=11 // pred_fallthru
          _
        // Predicated region
        $region25: #{tpu_custom_call.1} parent=11 // pred_check
          %p171 = pneg %p121
        $region26: #{tpu_custom_call.1} parent=11 // pred_check_branch
          %173 = sbr.rel (%p171) target = $region28
        $region27: #{tpu_custom_call.1} parent=11 // pred_region
          _
        $region28: #{tpu_custom_call.1} parent=11 // pred_fallthru
          _
      $region12: #{tpu_custom_call.1} parent=5 // pred_fallthru
        _
      %p174 = scmp.lt.s32.totalorder %s11, 2
      // Predicated region
      $region29: #{tpu_custom_call.1} parent=5 // pred_check
        %p175 = pneg %p174
      $region30: #{tpu_custom_call.1} parent=5 // pred_check_branch
        %177 = sbr.rel (%p175) target = $region32
      $region31: #{tpu_custom_call.1} parent=5 // pred_region
        // Predicated region
        $region33: #{tpu_custom_call.1} parent=31 // pred_check
          %p178 = pneg %p31
        $region34: #{tpu_custom_call.1} parent=31 // pred_check_branch
          %180 = sbr.rel (%p178) target = $region36
        $region35: #{tpu_custom_call.1} parent=31 // pred_region
          %s181 = smul.u32 14, %s11
          %s182 = ssub.s32 25, %s181
          %p183 = scmp.lt.s32.totalorder %s182, 14
          %s184 = scalar_select %p183, %s182, 14
          %s185 = smul.u32 4, %s184
          %p186 = scmp.lt.s32.totalorder %s181, 24
          %s187 = scalar_select %p186, %s181, 24
          %s188 = smul.addr %s187, 4
          %s189 = scalar_lea.vmem %s0, %s188
          %s190 = smul.u32 14, %s11
          %s191 = ssub.s32 25, %s190
          %p192 = scmp.lt.s32.totalorder %s191, 14
          %s193 = scalar_select %p192, %s191, 14
          %s194 = smul.u32 4, %s193
        $region36: #{tpu_custom_call.1} parent=31 // pred_fallthru
          _
      $region32: #{tpu_custom_call.1} parent=5 // pred_fallthru
        _
      %p195 = scmp.le.s32.totalorder 1, %s11
      %p196 = scmp.lt.s32.totalorder %s11, 3
      %p197 = pnand %p195, %p196
      %p198 = pneg %p197
      // Predicated region
      $region37: #{tpu_custom_call.1} parent=5 // pred_check
        _
      $region38: #{tpu_custom_call.1} parent=5 // pred_check_branch
        %200 = sbr.rel (%p197) target = $region40
      $region39: #{tpu_custom_call.1} parent=5 // pred_region
        %s201 = ssub.s32 %s11, 1
        %s202 = smul.u32 14, %s16
        %s203 = ssub.s32 25, %s202
        %p204 = scmp.lt.s32.totalorder %s203, 14
        %s205 = scalar_select %p204, %s203, 14
        %s206 = smul.u32 4, %s205
        %p207 = scmp.lt.s32.totalorder %s202, 24
        %s208 = scalar_select %p207, %s202, 24
        %s209 = smul.addr %s208, 4
        %s210 = scalar_lea.vmem %s0, %s209
        %p211 = pneg %p37
        %p212 = pneg %p34
        %p213 = pneg %p58
        %p214 = pneg %p55
        %p215 = pneg %p79
        %p216 = pneg %p76
        %p217 = pneg %p100
        %p218 = pneg %p97
        %p219 = pneg %p121
        %p220 = pneg %p118
        %p221 = pneg %p147
        %p222 = pneg %p144
        %s223 = sand.u32 %s134, 1
        %s224 = sand.u32 %s134, 1
        %s225 = smul.addr %s224, 112
        %s226 = scalar_lea.vmem [#allocation2], %s225
        %s227 = smul.u32 14, %s16
        %s228 = ssub.s32 25, %s227
        %p229 = scmp.lt.s32.totalorder %s228, 14
        %s230 = scalar_select %p229, %s228, 14
        %s231 = smul.u32 4, %s230
        %p232 = scmp.lt.s32.totalorder %s227, 24
        %s233 = scalar_select %p232, %s227, 24
        %s234 = smul.addr %s233, 4
        %s235 = scalar_lea.vmem %s0, %s234
        %s236 = smul.u32 14, %s16
        %s237 = ssub.s32 25, %s236
        %p238 = scmp.lt.s32.totalorder %s237, 14
        %s239 = scalar_select %p238, %s237, 14
        %s240 = smul.u32 4, %s239
        %s241 = smul.u32 14, %s16
        %s242 = ssub.s32 25, %s241
        %p243 = scmp.lt.s32.totalorder %s242, 14
        %s244 = scalar_select %p243, %s242, 14
        %s245 = smul.u32 8, %s244
        %v247 = vld [vmem:[%s235] sm:$0xf]
        %v248 = vld [vmem:[%s235 + $0x4] sm:$0xf]
        %v249 = vld [vmem:[%s235 + $0x8] sm:$0xf]
        %v250 = vld [vmem:[%s235 + $0xc] sm:$0xf]
        %v251 = vld [vmem:[%s235 + $0x10] sm:$0xf]
        %v252 = vld [vmem:[%s235 + $0x14] sm:$0xf]
        %v253 = vld [vmem:[%s235 + $0x18] sm:$0xf]
        %v254 = vld [vmem:[%s235 + $0x1c] sm:$0xf]
        %v255 = vld [vmem:[%s235 + $0x20] sm:$0xf]
        %v256 = vld [vmem:[%s235 + $0x24] sm:$0xf]
        %v257 = vld [vmem:[%s235 + $0x28] sm:$0xf]
        %v258 = vld [vmem:[%s235 + $0x2c] sm:$0xf]
        %v259 = vld [vmem:[%s235 + $0x30] sm:$0xf]
        %v260 = vld [vmem:[%s235 + $0x34] sm:$0xf]
        %v261 = vld [vmem:[%s4] sm:$0x1]
        %v262 = vld [vmem:[%s4 + $0x1] sm:$0x1]
        %v263 = vld [vmem:[%s1] sm:$0xf]
        %v264 = vld [vmem:[%s1 + $0x4] sm:$0xf]
        %v265 = vld [vmem:[%s1 + $0x8] sm:$0xf]
        %v266 = vld [vmem:[%s1 + $0xc] sm:$0xf]
        %v267 = vld [vmem:[%s1 + $0x10] sm:$0xf]
        %v268 = vld [vmem:[%s1 + $0x14] sm:$0xf]
        %v269 = vld [vmem:[%s1 + $0x18] sm:$0xf]
        %v270 = vld [vmem:[%s1 + $0x1c] sm:$0xf]
        %v285 = vunpack.c.l.b16 %v247
        %v286 = vunpack.c.l.b16 %v248
        %v287 = vunpack.c.l.b16 %v249
        %v288 = vunpack.c.l.b16 %v250
        %v289 = vunpack.c.l.b16 %v251
        %v290 = vunpack.c.l.b16 %v252
        %v291 = vunpack.c.l.b16 %v253
        %v292 = vunpack.c.l.b16 %v254
        %v293 = vunpack.c.l.b16 %v255
        %v294 = vunpack.c.l.b16 %v256
        %v295 = vunpack.c.l.b16 %v257
        %v296 = vunpack.c.l.b16 %v258
        %v297 = vunpack.c.l.b16 %v259
        %v298 = vunpack.c.l.b16 %v260
        %v299 = vpack.c.b16 %v286, %v285
        %v300 = vpack.c.b16 %v288, %v287
        %v301 = vpack.c.b16 %v290, %v289
        %v302 = vpack.c.b16 %v292, %v291
        %v303 = vpack.c.b16 %v294, %v293
        %v304 = vpack.c.b16 %v296, %v295
        %v305 = vpack.c.b16 %v298, %v297
        %v314 = vunpack.c.l.b16 %v263
        %v315 = vunpack.c.l.b16 %v264
        %v316 = vunpack.c.l.b16 %v265
        %v317 = vunpack.c.l.b16 %v266
        %v318 = vunpack.c.l.b16 %v267
        %v319 = vunpack.c.l.b16 %v268
        %v320 = vunpack.c.l.b16 %v269
        %v321 = vunpack.c.l.b16 %v270
        %v322 = vpack.c.b16 %v315, %v314
        %v323 = vpack.c.b16 %v317, %v316
        %v324 = vpack.c.b16 %v319, %v318
        %v325 = vpack.c.b16 %v321, %v320
        %vm330 = vcmask 523264
        %v332 = vsel %vm330, %v299, 0
        %v335 = vsel %vm330, %v300, 0
        %v338 = vsel %vm330, %v301, 0
        %v341 = vsel %vm330, %v302, 0
        %v344 = vsel %vm330, %v303, 0
        %v347 = vsel %vm330, %v304, 0
        %v350 = vsel %vm330, %v305, 0
        %352 = vmatpush.bf16.msra.mxu0 0
        %353 = vmatpush.bf16.msra.mxu0 0
        %354 = vmatpush.bf16.msra.mxu0 0
        %355 = vmatpush.bf16.msra.mxu0 0
        %356 = vmatpush.bf16.msra.mxu0 %v325
        %357 = vmatpush.bf16.msra.mxu0 %v324
        %358 = vmatpush.bf16.msra.mxu0 %v323
        %359 = vmatpush.bf16.msra.mxu0 %v322
        %360 = vmatmul.bf16.gmra.mxu0 %v332
        %v361 = vpop.f32.mrf.mxu0
        %v362 = vadd.f32 0.0, %v361
        %v363 = vpop.f32.mrf.mxu0
        %v364 = vadd.f32 0.0, %v363
        %365 = vmatmul.bf16.gmra.mxu0 %v335
        %v366 = vpop.f32.mrf.mxu0
        %v367 = vadd.f32 0.0, %v366
        %v368 = vpop.f32.mrf.mxu0
        %v369 = vadd.f32 0.0, %v368
        %370 = vmatmul.bf16.gmra.mxu0 %v338
        %v371 = vpop.f32.mrf.mxu0
        %v372 = vadd.f32 0.0, %v371
        %v373 = vpop.f32.mrf.mxu0
        %v374 = vadd.f32 0.0, %v373
        %375 = vmatmul.bf16.gmra.mxu0 %v341
        %v376 = vpop.f32.mrf.mxu0
        %v377 = vadd.f32 0.0, %v376
        %v378 = vpop.f32.mrf.mxu0
        %v379 = vadd.f32 0.0, %v378
        %380 = vmatmul.bf16.gmra.mxu0 %v344
        %v381 = vpop.f32.mrf.mxu0
        %v382 = vadd.f32 0.0, %v381
        %v383 = vpop.f32.mrf.mxu0
        %v384 = vadd.f32 0.0, %v383
        %385 = vmatmul.bf16.gmra.mxu0 %v347
        %v386 = vpop.f32.mrf.mxu0
        %v387 = vadd.f32 0.0, %v386
        %v388 = vpop.f32.mrf.mxu0
        %v389 = vadd.f32 0.0, %v388
        %390 = vmatmul.bf16.gmra.mxu0 %v350
        %v391 = vpop.f32.mrf.mxu0
        %v392 = vadd.f32 0.0, %v391
        %v393 = vpop.f32.mrf.mxu0
        %v394 = vadd.f32 0.0, %v393
        %395 = vdwg.mxu0
        %v396 = vperm.slane %v261, 0
        %v397 = vmul.f32 %v362, %v396
        %v398 = vmul.f32 %v364, %v396
        %v399 = vmul.f32 %v367, %v396
        %v400 = vmul.f32 %v369, %v396
        %v401 = vmul.f32 %v372, %v396
        %v402 = vmul.f32 %v374, %v396
        %v403 = vmul.f32 %v377, %v396
        %v404 = vmul.f32 %v379, %v396
        %v405 = vmul.f32 %v382, %v396
        %v406 = vmul.f32 %v384, %v396
        %v407 = vmul.f32 %v387, %v396
        %v408 = vmul.f32 %v389, %v396
        %v409 = vmul.f32 %v392, %v396
        %v410 = vmul.f32 %v394, %v396
        %v411 = vperm.slane %v262, 0
        %v412 = vadd.f32 %v397, %v411
        %v413 = vadd.f32 %v398, %v411
        %v414 = vadd.f32 %v399, %v411
        %v415 = vadd.f32 %v400, %v411
        %v416 = vadd.f32 %v401, %v411
        %v417 = vadd.f32 %v402, %v411
        %v418 = vadd.f32 %v403, %v411
        %v419 = vadd.f32 %v404, %v411
        %v420 = vadd.f32 %v405, %v411
        %v421 = vadd.f32 %v406, %v411
        %v422 = vadd.f32 %v407, %v411
        %v423 = vadd.f32 %v408, %v411
        %v424 = vadd.f32 %v409, %v411
        %v425 = vadd.f32 %v410, %v411
        %v426 = vmax.f32 %v412, 0.0
        %v427 = vmax.f32 %v413, 0.0
        %v428 = vmax.f32 %v414, 0.0
        %v429 = vmax.f32 %v415, 0.0
        %v430 = vmax.f32 %v416, 0.0
        %v431 = vmax.f32 %v417, 0.0
        %v432 = vmax.f32 %v418, 0.0
        %v433 = vmax.f32 %v419, 0.0
        %v434 = vmax.f32 %v420, 0.0
        %v435 = vmax.f32 %v421, 0.0
        %v436 = vmax.f32 %v422, 0.0
        %v437 = vmax.f32 %v423, 0.0
        %v438 = vmax.f32 %v424, 0.0
        %v439 = vmax.f32 %v425, 0.0
        %v440 = vpack.c.bf16 %v427, %v426
        %v441 = vpack.c.bf16 %v429, %v428
        %v442 = vpack.c.bf16 %v431, %v430
        %v443 = vpack.c.bf16 %v433, %v432
        %v444 = vpack.c.bf16 %v435, %v434
        %v445 = vpack.c.bf16 %v437, %v436
        %v446 = vpack.c.bf16 %v439, %v438
        %v447 = vld [vmem:[%s4 + $0x2] sm:$0x1]
        %v448 = vld [vmem:[%s4 + $0x3] sm:$0x1]
        %v449 = vld [vmem:[%s2] sm:$0xf]
        %v450 = vld [vmem:[%s2 + $0x4] sm:$0xf]
        %v451 = vld [vmem:[%s2 + $0x8] sm:$0xf]
        %v452 = vld [vmem:[%s2 + $0xc] sm:$0xf]
        %v453 = vld [vmem:[%s2 + $0x10] sm:$0xf]
        %v454 = vld [vmem:[%s2 + $0x14] sm:$0xf]
        %v455 = vld [vmem:[%s2 + $0x18] sm:$0xf]
        %v456 = vld [vmem:[%s2 + $0x1c] sm:$0xf]
        %v465 = vunpack.c.l.b16 %v449
        %v466 = vunpack.c.l.b16 %v450
        %v467 = vunpack.c.l.b16 %v451
        %v468 = vunpack.c.l.b16 %v452
        %v469 = vunpack.c.l.b16 %v453
        %v470 = vunpack.c.l.b16 %v454
        %v471 = vunpack.c.l.b16 %v455
        %v472 = vunpack.c.l.b16 %v456
        %v473 = vpack.c.b16 %v466, %v465
        %v474 = vpack.c.b16 %v468, %v467
        %v475 = vpack.c.b16 %v470, %v469
        %v476 = vpack.c.b16 %v472, %v471
        %v482 = vsel %vm330, %v440, 0
        %v485 = vsel %vm330, %v441, 0
        %v488 = vsel %vm330, %v442, 0
        %v491 = vsel %vm330, %v443, 0
        %v494 = vsel %vm330, %v444, 0
        %v497 = vsel %vm330, %v445, 0
        %v500 = vsel %vm330, %v446, 0
        %502 = vmatpush.bf16.msra.mxu0 0
        %503 = vmatpush.bf16.msra.mxu0 0
        %504 = vmatpush.bf16.msra.mxu0 0
        %505 = vmatpush.bf16.msra.mxu0 0
        %506 = vmatpush.bf16.msra.mxu0 %v476
        %507 = vmatpush.bf16.msra.mxu0 %v475
        %508 = vmatpush.bf16.msra.mxu0 %v474
        %509 = vmatpush.bf16.msra.mxu0 %v473
        %510 = vmatmul.bf16.gmra.mxu0 %v482
        %v511 = vpop.f32.mrf.mxu0
        %v512 = vadd.f32 0.0, %v511
        %v513 = vpop.f32.mrf.mxu0
        %v514 = vadd.f32 0.0, %v513
        %515 = vmatmul.bf16.gmra.mxu0 %v485
        %v516 = vpop.f32.mrf.mxu0
        %v517 = vadd.f32 0.0, %v516
        %v518 = vpop.f32.mrf.mxu0
        %v519 = vadd.f32 0.0, %v518
        %520 = vmatmul.bf16.gmra.mxu0 %v488
        %v521 = vpop.f32.mrf.mxu0
        %v522 = vadd.f32 0.0, %v521
        %v523 = vpop.f32.mrf.mxu0
        %v524 = vadd.f32 0.0, %v523
        %525 = vmatmul.bf16.gmra.mxu0 %v491
        %v526 = vpop.f32.mrf.mxu0
        %v527 = vadd.f32 0.0, %v526
        %v528 = vpop.f32.mrf.mxu0
        %v529 = vadd.f32 0.0, %v528
        %530 = vmatmul.bf16.gmra.mxu0 %v494
        %v531 = vpop.f32.mrf.mxu0
        %v532 = vadd.f32 0.0, %v531
        %v533 = vpop.f32.mrf.mxu0
        %v534 = vadd.f32 0.0, %v533
        %535 = vmatmul.bf16.gmra.mxu0 %v497
        %v536 = vpop.f32.mrf.mxu0
        %v537 = vadd.f32 0.0, %v536
        %v538 = vpop.f32.mrf.mxu0
        %v539 = vadd.f32 0.0, %v538
        %540 = vmatmul.bf16.gmra.mxu0 %v500
        %v541 = vpop.f32.mrf.mxu0
        %v542 = vadd.f32 0.0, %v541
        %v543 = vpop.f32.mrf.mxu0
        %v544 = vadd.f32 0.0, %v543
        %545 = vdwg.mxu0
        %v546 = vperm.slane %v447, 0
        %v547 = vmul.f32 %v512, %v546
        %v548 = vmul.f32 %v514, %v546
        %v549 = vmul.f32 %v517, %v546
        %v550 = vmul.f32 %v519, %v546
        %v551 = vmul.f32 %v522, %v546
        %v552 = vmul.f32 %v524, %v546
        %v553 = vmul.f32 %v527, %v546
        %v554 = vmul.f32 %v529, %v546
        %v555 = vmul.f32 %v532, %v546
        %v556 = vmul.f32 %v534, %v546
        %v557 = vmul.f32 %v537, %v546
        %v558 = vmul.f32 %v539, %v546
        %v559 = vmul.f32 %v542, %v546
        %v560 = vmul.f32 %v544, %v546
        %v561 = vperm.slane %v448, 0
        %v562 = vadd.f32 %v547, %v561
        %v563 = vadd.f32 %v548, %v561
        %v564 = vadd.f32 %v549, %v561
        %v565 = vadd.f32 %v550, %v561
        %v566 = vadd.f32 %v551, %v561
        %v567 = vadd.f32 %v552, %v561
        %v568 = vadd.f32 %v553, %v561
        %v569 = vadd.f32 %v554, %v561
        %v570 = vadd.f32 %v555, %v561
        %v571 = vadd.f32 %v556, %v561
        %v572 = vadd.f32 %v557, %v561
        %v573 = vadd.f32 %v558, %v561
        %v574 = vadd.f32 %v559, %v561
        %v575 = vadd.f32 %v560, %v561
        %v576 = vmax.f32 %v562, 0.0
        %v577 = vmax.f32 %v563, 0.0
        %v578 = vmax.f32 %v564, 0.0
        %v579 = vmax.f32 %v565, 0.0
        %v580 = vmax.f32 %v566, 0.0
        %v581 = vmax.f32 %v567, 0.0
        %v582 = vmax.f32 %v568, 0.0
        %v583 = vmax.f32 %v569, 0.0
        %v584 = vmax.f32 %v570, 0.0
        %v585 = vmax.f32 %v571, 0.0
        %v586 = vmax.f32 %v572, 0.0
        %v587 = vmax.f32 %v573, 0.0
        %v588 = vmax.f32 %v574, 0.0
        %v589 = vmax.f32 %v575, 0.0
        %v590 = vpack.c.bf16 %v577, %v576
        %v591 = vpack.c.bf16 %v579, %v578
        %v592 = vpack.c.bf16 %v581, %v580
        %v593 = vpack.c.bf16 %v583, %v582
        %v594 = vpack.c.bf16 %v585, %v584
        %v595 = vpack.c.bf16 %v587, %v586
        %v596 = vpack.c.bf16 %v589, %v588
        %v597 = vld [vmem:[%s4 + $0x4] sm:$0x1]
        %v598 = vld [vmem:[%s4 + $0x5] sm:$0x1]
        %v599 = vld [vmem:[%s3] sm:$0xf]
        %v600 = vld [vmem:[%s3 + $0x4] sm:$0xf]
        %v601 = vld [vmem:[%s3 + $0x8] sm:$0xf]
        %v602 = vld [vmem:[%s3 + $0xc] sm:$0xf]
        %v603 = vld [vmem:[%s3 + $0x10] sm:$0xf]
        %v604 = vld [vmem:[%s3 + $0x14] sm:$0xf]
        %v605 = vld [vmem:[%s3 + $0x18] sm:$0xf]
        %v606 = vld [vmem:[%s3 + $0x1c] sm:$0xf]
        %v615 = vunpack.c.l.b16 %v599
        %v616 = vunpack.c.l.b16 %v600
        %v617 = vunpack.c.l.b16 %v601
        %v618 = vunpack.c.l.b16 %v602
        %v619 = vunpack.c.l.b16 %v603
        %v620 = vunpack.c.l.b16 %v604
        %v621 = vunpack.c.l.b16 %v605
        %v622 = vunpack.c.l.b16 %v606
        %v623 = vpack.c.b16 %v616, %v615
        %v624 = vpack.c.b16 %v618, %v617
        %v625 = vpack.c.b16 %v620, %v619
        %v626 = vpack.c.b16 %v622, %v621
        %v632 = vsel %vm330, %v590, 0
        %v635 = vsel %vm330, %v591, 0
        %v638 = vsel %vm330, %v592, 0
        %v641 = vsel %vm330, %v593, 0
        %v644 = vsel %vm330, %v594, 0
        %v647 = vsel %vm330, %v595, 0
        %v650 = vsel %vm330, %v596, 0
        %652 = vmatpush.bf16.msra.mxu0 0
        %653 = vmatpush.bf16.msra.mxu0 0
        %654 = vmatpush.bf16.msra.mxu0 0
        %655 = vmatpush.bf16.msra.mxu0 0
        %656 = vmatpush.bf16.msra.mxu0 %v626
        %657 = vmatpush.bf16.msra.mxu0 %v625
        %658 = vmatpush.bf16.msra.mxu0 %v624
        %659 = vmatpush.bf16.msra.mxu0 %v623
        %660 = vmatmul.bf16.gmra.mxu0 %v632
        %v661 = vpop.f32.mrf.mxu0
        %v662 = vadd.f32 0.0, %v661
        %v663 = vpop.f32.mrf.mxu0
        %v664 = vadd.f32 0.0, %v663
        %665 = vmatmul.bf16.gmra.mxu0 %v635
        %v666 = vpop.f32.mrf.mxu0
        %v667 = vadd.f32 0.0, %v666
        %v668 = vpop.f32.mrf.mxu0
        %v669 = vadd.f32 0.0, %v668
        %670 = vmatmul.bf16.gmra.mxu0 %v638
        %v671 = vpop.f32.mrf.mxu0
        %v672 = vadd.f32 0.0, %v671
        %v673 = vpop.f32.mrf.mxu0
        %v674 = vadd.f32 0.0, %v673
        %675 = vmatmul.bf16.gmra.mxu0 %v641
        %v676 = vpop.f32.mrf.mxu0
        %v677 = vadd.f32 0.0, %v676
        %v678 = vpop.f32.mrf.mxu0
        %v679 = vadd.f32 0.0, %v678
        %680 = vmatmul.bf16.gmra.mxu0 %v644
        %v681 = vpop.f32.mrf.mxu0
        %v682 = vadd.f32 0.0, %v681
        %v683 = vpop.f32.mrf.mxu0
        %v684 = vadd.f32 0.0, %v683
        %685 = vmatmul.bf16.gmra.mxu0 %v647
        %v686 = vpop.f32.mrf.mxu0
        %v687 = vadd.f32 0.0, %v686
        %v688 = vpop.f32.mrf.mxu0
        %v689 = vadd.f32 0.0, %v688
        %690 = vmatmul.bf16.gmra.mxu0 %v650
        %v691 = vpop.f32.mrf.mxu0
        %v692 = vadd.f32 0.0, %v691
        %v693 = vpop.f32.mrf.mxu0
        %v694 = vadd.f32 0.0, %v693
        %695 = vdwg.mxu0
        %v696 = vperm.slane %v597, 0
        %v697 = vmul.f32 %v662, %v696
        %v698 = vmul.f32 %v664, %v696
        %v699 = vmul.f32 %v667, %v696
        %v700 = vmul.f32 %v669, %v696
        %v701 = vmul.f32 %v672, %v696
        %v702 = vmul.f32 %v674, %v696
        %v703 = vmul.f32 %v677, %v696
        %v704 = vmul.f32 %v679, %v696
        %v705 = vmul.f32 %v682, %v696
        %v706 = vmul.f32 %v684, %v696
        %v707 = vmul.f32 %v687, %v696
        %v708 = vmul.f32 %v689, %v696
        %v709 = vmul.f32 %v692, %v696
        %v710 = vmul.f32 %v694, %v696
        %v711 = vperm.slane %v598, 0
        %v712 = vadd.f32 %v697, %v711
        %v713 = vadd.f32 %v698, %v711
        %v714 = vadd.f32 %v699, %v711
        %v715 = vadd.f32 %v700, %v711
        %v716 = vadd.f32 %v701, %v711
        %v717 = vadd.f32 %v702, %v711
        %v718 = vadd.f32 %v703, %v711
        %v719 = vadd.f32 %v704, %v711
        %v720 = vadd.f32 %v705, %v711
        %v721 = vadd.f32 %v706, %v711
        %v722 = vadd.f32 %v707, %v711
        %v723 = vadd.f32 %v708, %v711
        %v724 = vadd.f32 %v709, %v711
        %v725 = vadd.f32 %v710, %v711
        %v726 = vmax.f32 %v712, 0.0
        %v727 = vmax.f32 %v713, 0.0
        %v728 = vmax.f32 %v714, 0.0
        %v729 = vmax.f32 %v715, 0.0
        %v730 = vmax.f32 %v716, 0.0
        %v731 = vmax.f32 %v717, 0.0
        %v732 = vmax.f32 %v718, 0.0
        %v733 = vmax.f32 %v719, 0.0
        %v734 = vmax.f32 %v720, 0.0
        %v735 = vmax.f32 %v721, 0.0
        %v736 = vmax.f32 %v722, 0.0
        %v737 = vmax.f32 %v723, 0.0
        %v738 = vmax.f32 %v724, 0.0
        %v739 = vmax.f32 %v725, 0.0
        %v740 = vld [vmem:[%s4 + $0x6] sm:$0x1]
        %v741 = vperm.slane %v740, 0
        %v742 = vmul.f32 %v726, %v741
        %v743 = vmul.f32 %v727, %v741
        %v744 = vmul.f32 %v728, %v741
        %v745 = vmul.f32 %v729, %v741
        %v746 = vmul.f32 %v730, %v741
        %v747 = vmul.f32 %v731, %v741
        %v748 = vmul.f32 %v732, %v741
        %v749 = vmul.f32 %v733, %v741
        %v750 = vmul.f32 %v734, %v741
        %v751 = vmul.f32 %v735, %v741
        %v752 = vmul.f32 %v736, %v741
        %v753 = vmul.f32 %v737, %v741
        %v754 = vmul.f32 %v738, %v741
        %v755 = vmul.f32 %v739, %v741
        %v756 = vsel %vm330, %v742, 0.0
        %757 = vadd.xlane.f32.xlu0 %v756
        %v758 = vpop.xlane.xlu0 %757
        %v759 = vsel %vm330, %v743, 0.0
        %760 = vadd.xlane.f32.xlu0 %v759
        %v761 = vpop.xlane.xlu0 %760
        %v762 = vsel %vm330, %v744, 0.0
        %763 = vadd.xlane.f32.xlu0 %v762
        %v764 = vpop.xlane.xlu0 %763
        %v765 = vsel %vm330, %v745, 0.0
        %766 = vadd.xlane.f32.xlu0 %v765
        %v767 = vpop.xlane.xlu0 %766
        %v768 = vsel %vm330, %v746, 0.0
        %769 = vadd.xlane.f32.xlu0 %v768
        %v770 = vpop.xlane.xlu0 %769
        %v771 = vsel %vm330, %v747, 0.0
        %772 = vadd.xlane.f32.xlu0 %v771
        %v773 = vpop.xlane.xlu0 %772
        %v774 = vsel %vm330, %v748, 0.0
        %775 = vadd.xlane.f32.xlu0 %v774
        %v776 = vpop.xlane.xlu0 %775
        %v777 = vsel %vm330, %v749, 0.0
        %778 = vadd.xlane.f32.xlu0 %v777
        %v779 = vpop.xlane.xlu0 %778
        %v780 = vsel %vm330, %v750, 0.0
        %781 = vadd.xlane.f32.xlu0 %v780
        %v782 = vpop.xlane.xlu0 %781
        %v783 = vsel %vm330, %v751, 0.0
        %784 = vadd.xlane.f32.xlu0 %v783
        %v785 = vpop.xlane.xlu0 %784
        %v786 = vsel %vm330, %v752, 0.0
        %787 = vadd.xlane.f32.xlu0 %v786
        %v788 = vpop.xlane.xlu0 %787
        %v789 = vsel %vm330, %v753, 0.0
        %790 = vadd.xlane.f32.xlu0 %v789
        %v791 = vpop.xlane.xlu0 %790
        %v792 = vsel %vm330, %v754, 0.0
        %793 = vadd.xlane.f32.xlu0 %v792
        %v794 = vpop.xlane.xlu0 %793
        %v795 = vsel %vm330, %v755, 0.0
        %796 = vadd.xlane.f32.xlu0 %v795
        %v797 = vpop.xlane.xlu0 %796
        %v798 = vld [vmem:[%s4 + $0x7] sm:$0x1]
        %v799 = vperm.slane %v798, 0
        %v800 = vadd.f32 %v758, %v799
        %v801 = vadd.f32 %v761, %v799
        %v802 = vadd.f32 %v764, %v799
        %v803 = vadd.f32 %v767, %v799
        %v804 = vadd.f32 %v770, %v799
        %v805 = vadd.f32 %v773, %v799
        %v806 = vadd.f32 %v776, %v799
        %v807 = vadd.f32 %v779, %v799
        %v808 = vadd.f32 %v782, %v799
        %v809 = vadd.f32 %v785, %v799
        %v810 = vadd.f32 %v788, %v799
        %v811 = vadd.f32 %v791, %v799
        %v812 = vadd.f32 %v794, %v799
        %v813 = vadd.f32 %v797, %v799
        %vm814 = vcmask 7168
        %815 = vst.msk [vmem:[%s226] sm:$0xff] %vm814, %v800
        %816 = vst.msk [vmem:[%s226 + $0x8] sm:$0xff] %vm814, %v801
        %817 = vst.msk [vmem:[%s226 + $0x10] sm:$0xff] %vm814, %v802
        %818 = vst.msk [vmem:[%s226 + $0x18] sm:$0xff] %vm814, %v803
        %819 = vst.msk [vmem:[%s226 + $0x20] sm:$0xff] %vm814, %v804
        %820 = vst.msk [vmem:[%s226 + $0x28] sm:$0xff] %vm814, %v805
        %821 = vst.msk [vmem:[%s226 + $0x30] sm:$0xff] %vm814, %v806
        %822 = vst.msk [vmem:[%s226 + $0x38] sm:$0xff] %vm814, %v807
        %823 = vst.msk [vmem:[%s226 + $0x40] sm:$0xff] %vm814, %v808
        %824 = vst.msk [vmem:[%s226 + $0x48] sm:$0xff] %vm814, %v809
        %825 = vst.msk [vmem:[%s226 + $0x50] sm:$0xff] %vm814, %v810
        %826 = vst.msk [vmem:[%s226 + $0x58] sm:$0xff] %vm814, %v811
        %827 = vst.msk [vmem:[%s226 + $0x60] sm:$0xff] %vm814, %v812
        %828 = vst.msk [vmem:[%s226 + $0x68] sm:$0xff] %vm814, %v813
        %s829 = sand.u32 %s134, 1
        %s830 = sand.u32 %s134, 1
        %s831 = smul.addr %s830, 112
        %s832 = scalar_lea.vmem [#allocation2], %s831
        // Predicated region
        $region41: #{tpu_custom_call.1} parent=39 // pred_check
          %p833 = pneg %p144
        $region42: #{tpu_custom_call.1} parent=39 // pred_check_branch
          %835 = sbr.rel (%p833) target = $region44
        $region43: #{tpu_custom_call.1} parent=39 // pred_region
          %s836 = smul.u32 14, %s16
          %s837 = ssub.s32 25, %s836
          %p838 = scmp.lt.s32.totalorder %s837, 14
          %s839 = scalar_select %p838, %s837, 14
          %s840 = smul.u32 8, %s839
          %p841 = scmp.ne.s32.totalorder 0, %s840
          %s842 = smul.addr %s836, 8
          %s843 = scalar_lea.vmem %s5, %s842
          // Predicated region
          $region45: #{tpu_custom_call.1} parent=43 // pred_check
            %p844 = pneg %p841
          $region46: #{tpu_custom_call.1} parent=43 // pred_check_branch
            %846 = sbr.rel (%p844) target = $region48
          $region47: #{tpu_custom_call.1} parent=43 // pred_region
            // Predicated region
            $region49: #{tpu_custom_call.1} parent=47 // pred_check
              _
            $region50: #{tpu_custom_call.1} parent=47 // pred_check_branch
              %848 = sbr.rel (0) target = $region52
            $region51: #{tpu_custom_call.1} parent=47 // pred_region
              // Predicated region
              $region71: #{tpu_custom_call.1} parent=51 // pred_check
                _
              $region72: #{tpu_custom_call.1} parent=51 // pred_check_branch
                %925 = sbr.rel (0) target = $region74
              $region73: #{tpu_custom_call.1} parent=51 // pred_region
                %s926 = sdiv.u32.pop %s839, 14
                %s927 = srem.u32.pop %s839, 14
                // While loop
                $region75: #{tpu_custom_call.1} parent=73 // loop_pre_header
                  _
                $region76: #{tpu_custom_call.1} parent=73 // loop_header
                  %s929 = sphi 0, %s931
                  %p930 = scmp.ge.s32.totalorder %s929, %s926
                  %s934 = sphi 0, %s967
                  %s935 = sphi %s832, %s970
                  %s936 = sphi %s843, %s971
                $region77: #{tpu_custom_call.1} parent=73 // loop_header_branch
                  %933 = sbr.rel (%p930) target = $region81
                $region78: #{tpu_custom_call.1} parent=73 // loop_body
                  %v937 = vld [vmem:[%s935] sm:$0xff]
                  %938 = vst [vmem:[%s936] sm:$0xff] %v937
                  %v939 = vld [vmem:[%s935 + $0x8] sm:$0xff]
                  %940 = vst [vmem:[%s936 + $0x8] sm:$0xff] %v939
                  %v941 = vld [vmem:[%s935 + $0x10] sm:$0xff]
                  %942 = vst [vmem:[%s936 + $0x10] sm:$0xff] %v941
                  %v943 = vld [vmem:[%s935 + $0x18] sm:$0xff]
                  %944 = vst [vmem:[%s936 + $0x18] sm:$0xff] %v943
                  %v945 = vld [vmem:[%s935 + $0x20] sm:$0xff]
                  %946 = vst [vmem:[%s936 + $0x20] sm:$0xff] %v945
                  %v947 = vld [vmem:[%s935 + $0x28] sm:$0xff]
                  %948 = vst [vmem:[%s936 + $0x28] sm:$0xff] %v947
                  %v949 = vld [vmem:[%s935 + $0x30] sm:$0xff]
                  %950 = vst [vmem:[%s936 + $0x30] sm:$0xff] %v949
                  %v951 = vld [vmem:[%s935 + $0x38] sm:$0xff]
                  %952 = vst [vmem:[%s936 + $0x38] sm:$0xff] %v951
                  %v953 = vld [vmem:[%s935 + $0x40] sm:$0xff]
                  %954 = vst [vmem:[%s936 + $0x40] sm:$0xff] %v953
                  %v955 = vld [vmem:[%s935 + $0x48] sm:$0xff]
                  %956 = vst [vmem:[%s936 + $0x48] sm:$0xff] %v955
                  %v957 = vld [vmem:[%s935 + $0x50] sm:$0xff]
                  %958 = vst [vmem:[%s936 + $0x50] sm:$0xff] %v957
                  %v959 = vld [vmem:[%s935 + $0x58] sm:$0xff]
                  %960 = vst [vmem:[%s936 + $0x58] sm:$0xff] %v959
                  %v961 = vld [vmem:[%s935 + $0x60] sm:$0xff]
                  %962 = vst [vmem:[%s936 + $0x60] sm:$0xff] %v961
                  %v963 = vld [vmem:[%s935 + $0x68] sm:$0xff]
                  %964 = vst [vmem:[%s936 + $0x68] sm:$0xff] %v963
                  %s965 = sadd.s32 1, %s934
                  %p966 = scmp.ge.s32.totalorder %s965, %s926
                  %s967 = scalar_select %p966, 0, %s965
                  %s968 = smul.u32 %s967, 112
                  %s969 = smul.u32 %s967, 112
                  %s970 = scalar_lea.vmem %s832, %s968 [#allocation2]
                  %s971 = scalar_lea.vmem %s843, %s969
                $region79: #{tpu_custom_call.1} parent=73 // loop_footer
                  %s931 = sadd.s32 %s929, 1
                $region80: #{tpu_custom_call.1} parent=73 // loop_footer_branch
                  %928 = sbr.rel target = $region76
                $region81: #{tpu_custom_call.1} parent=73 // loop_exit
                  _
                %s972 = sdiv.u32.pop %s839, 14
                %s973 = srem.u32.pop %s839, 14
                %s974 = smul.u32 %s972, 14
                %s975 = smul.u32 8, %s974
                %s976 = scalar_lea.vmem %s832, %s975 [#allocation2]
                %s977 = smul.u32 8, %s974
                %s978 = scalar_lea.vmem %s843, %s977
                // While loop
                $region82: #{tpu_custom_call.1} parent=73 // loop_pre_header
                  _
                $region83: #{tpu_custom_call.1} parent=73 // loop_header
                  %s980 = sphi 0, %s982
                  %p981 = scmp.ge.s32.totalorder %s980, %s973
                  %s985 = sphi 0, %s992
                  %s986 = sphi %s976, %s995
                  %s987 = sphi %s978, %s996
                $region84: #{tpu_custom_call.1} parent=73 // loop_header_branch
                  %984 = sbr.rel (%p981) target = $region88
                $region85: #{tpu_custom_call.1} parent=73 // loop_body
                  %v988 = vld [vmem:[%s986] sm:$0xff]
                  %989 = vst [vmem:[%s987] sm:$0xff] %v988
                  %s990 = sadd.s32 1, %s985
                  %p991 = scmp.ge.s32.totalorder %s990, %s973
                  %s992 = scalar_select %p991, 0, %s990
                  %s993 = smul.u32 %s992, 8
                  %s994 = smul.u32 %s992, 8
                  %s995 = scalar_lea.vmem %s976, %s993 [#allocation2]
                  %s996 = scalar_lea.vmem %s978, %s994
                $region86: #{tpu_custom_call.1} parent=73 // loop_footer
                  %s982 = sadd.s32 %s980, 1
                $region87: #{tpu_custom_call.1} parent=73 // loop_footer_branch
                  %979 = sbr.rel target = $region83
                $region88: #{tpu_custom_call.1} parent=73 // loop_exit
                  _
              $region74: #{tpu_custom_call.1} parent=51 // pred_fallthru
                _
              // Predicated region
              $region89: #{tpu_custom_call.1} parent=51 // pred_check
                _
              $region90: #{tpu_custom_call.1} parent=51 // pred_check_branch
                %998 = sbr.rel target = $region92
              $region91: #{tpu_custom_call.1} parent=51 // pred_region
                _
              $region92: #{tpu_custom_call.1} parent=51 // pred_fallthru
                _
            $region52: #{tpu_custom_call.1} parent=47 // pred_fallthru
              _
            // Predicated region
            $region53: #{tpu_custom_call.1} parent=47 // pred_check
              _
            $region54: #{tpu_custom_call.1} parent=47 // pred_check_branch
              %850 = sbr.rel target = $region56
            $region55: #{tpu_custom_call.1} parent=47 // pred_region
              %s852 = ssub.s32 256, 1
              %s853 = sdiv.u32.pop %s839, 14
              %s854 = srem.u32.pop %s839, 14
              // While loop
              $region57: #{tpu_custom_call.1} parent=55 // loop_pre_header
                _
              $region58: #{tpu_custom_call.1} parent=55 // loop_header
                %s856 = sphi 0, %s858
                %p857 = scmp.ge.s32.totalorder %s856, %s853
                %s861 = sphi 0, %s894
                %s862 = sphi %s832, %s897
                %s863 = sphi %s843, %s898
              $region59: #{tpu_custom_call.1} parent=55 // loop_header_branch
                %860 = sbr.rel (%p857) target = $region63
              $region60: #{tpu_custom_call.1} parent=55 // loop_body
                %v864 = vld [vmem:[%s862] sm:%s852]
                %865 = vst [vmem:[%s863] sm:%s852] %v864
                %v866 = vld [vmem:[%s862 + $0x8] sm:%s852]
                %867 = vst [vmem:[%s863 + $0x8] sm:%s852] %v866
                %v868 = vld [vmem:[%s862 + $0x10] sm:%s852]
                %869 = vst [vmem:[%s863 + $0x10] sm:%s852] %v868
                %v870 = vld [vmem:[%s862 + $0x18] sm:%s852]
                %871 = vst [vmem:[%s863 + $0x18] sm:%s852] %v870
                %v872 = vld [vmem:[%s862 + $0x20] sm:%s852]
                %873 = vst [vmem:[%s863 + $0x20] sm:%s852] %v872
                %v874 = vld [vmem:[%s862 + $0x28] sm:%s852]
                %875 = vst [vmem:[%s863 + $0x28] sm:%s852] %v874
                %v876 = vld [vmem:[%s862 + $0x30] sm:%s852]
                %877 = vst [vmem:[%s863 + $0x30] sm:%s852] %v876
                %v878 = vld [vmem:[%s862 + $0x38] sm:%s852]
                %879 = vst [vmem:[%s863 + $0x38] sm:%s852] %v878
                %v880 = vld [vmem:[%s862 + $0x40] sm:%s852]
                %881 = vst [vmem:[%s863 + $0x40] sm:%s852] %v880
                %v882 = vld [vmem:[%s862 + $0x48] sm:%s852]
                %883 = vst [vmem:[%s863 + $0x48] sm:%s852] %v882
                %v884 = vld [vmem:[%s862 + $0x50] sm:%s852]
                %885 = vst [vmem:[%s863 + $0x50] sm:%s852] %v884
                %v886 = vld [vmem:[%s862 + $0x58] sm:%s852]
                %887 = vst [vmem:[%s863 + $0x58] sm:%s852] %v886
                %v888 = vld [vmem:[%s862 + $0x60] sm:%s852]
                %889 = vst [vmem:[%s863 + $0x60] sm:%s852] %v888
                %v890 = vld [vmem:[%s862 + $0x68] sm:%s852]
                %891 = vst [vmem:[%s863 + $0x68] sm:%s852] %v890
                %s892 = sadd.s32 1, %s861
                %p893 = scmp.ge.s32.totalorder %s892, %s853
                %s894 = scalar_select %p893, 0, %s892
                %s895 = smul.u32 %s894, 112
                %s896 = smul.u32 %s894, 112
                %s897 = scalar_lea.vmem %s832, %s895 [#allocation2]
                %s898 = scalar_lea.vmem %s843, %s896
              $region61: #{tpu_custom_call.1} parent=55 // loop_footer
                %s858 = sadd.s32 %s856, 1
              $region62: #{tpu_custom_call.1} parent=55 // loop_footer_branch
                %855 = sbr.rel target = $region58
              $region63: #{tpu_custom_call.1} parent=55 // loop_exit
                _
              %s899 = sdiv.u32.pop %s839, 14
              %s900 = srem.u32.pop %s839, 14
              %s901 = smul.u32 %s899, 14
              %s902 = smul.u32 8, %s901
              %s903 = scalar_lea.vmem %s832, %s902 [#allocation2]
              %s904 = smul.u32 8, %s901
              %s905 = scalar_lea.vmem %s843, %s904
              // While loop
              $region64: #{tpu_custom_call.1} parent=55 // loop_pre_header
                _
              $region65: #{tpu_custom_call.1} parent=55 // loop_header
                %s907 = sphi 0, %s909
                %p908 = scmp.ge.s32.totalorder %s907, %s900
                %s912 = sphi 0, %s919
                %s913 = sphi %s903, %s922
                %s914 = sphi %s905, %s923
              $region66: #{tpu_custom_call.1} parent=55 // loop_header_branch
                %911 = sbr.rel (%p908) target = $region70
              $region67: #{tpu_custom_call.1} parent=55 // loop_body
                %v915 = vld [vmem:[%s913] sm:%s852]
                %916 = vst [vmem:[%s914] sm:%s852] %v915
                %s917 = sadd.s32 1, %s912
                %p918 = scmp.ge.s32.totalorder %s917, %s900
                %s919 = scalar_select %p918, 0, %s917
                %s920 = smul.u32 %s919, 8
                %s921 = smul.u32 %s919, 8
                %s922 = scalar_lea.vmem %s903, %s920 [#allocation2]
                %s923 = scalar_lea.vmem %s905, %s921
              $region68: #{tpu_custom_call.1} parent=55 // loop_footer
                %s909 = sadd.s32 %s907, 1
              $region69: #{tpu_custom_call.1} parent=55 // loop_footer_branch
                %906 = sbr.rel target = $region65
              $region70: #{tpu_custom_call.1} parent=55 // loop_exit
                _
            $region56: #{tpu_custom_call.1} parent=47 // pred_fallthru
              _
          $region48: #{tpu_custom_call.1} parent=43 // pred_fallthru
            _
          %999 = vnop
        $region44: #{tpu_custom_call.1} parent=39 // pred_fallthru
          _
      $region40: #{tpu_custom_call.1} parent=5 // pred_fallthru
        _
      %p1000 = scmp.le.s32.totalorder 2, %s11
      // Predicated region
      $region93: #{tpu_custom_call.1} parent=5 // pred_check
        %p1001 = pneg %p1000
      $region94: #{tpu_custom_call.1} parent=5 // pred_check_branch
        %1003 = sbr.rel (%p1001) target = $region96
      $region95: #{tpu_custom_call.1} parent=5 // pred_region
        %s1004 = ssub.s32 %s11, 2
        // Predicated region
        $region97: #{tpu_custom_call.1} parent=95 // pred_check
          %p1005 = pneg %p150
        $region98: #{tpu_custom_call.1} parent=95 // pred_check_branch
          %1007 = sbr.rel (%p1005) target = $region100
        $region99: #{tpu_custom_call.1} parent=95 // pred_region
          %s1008 = sand.u32 %s135, 1
          %s1009 = sand.u32 %s135, 1
          %s1010 = smul.addr %s1009, 112
          %s1011 = scalar_lea.vmem [#allocation2], %s1010
        $region100: #{tpu_custom_call.1} parent=95 // pred_fallthru
          _
      $region96: #{tpu_custom_call.1} parent=5 // pred_fallthru
        _
    $region6: #{tpu_custom_call.1} parent=1 // loop_footer
      %s15 = sadd.s32 1, %s11
    $region7: #{tpu_custom_call.1} parent=1 // loop_footer_branch
      %10 = sbr.rel target = $region3
    $region8: #{tpu_custom_call.1} parent=1 // loop_exit
      _

</llo_original>
